<compile_context>
chip_gen: v7x
topology: tpu7x:2x2x1
jax: 0.10.0
libtpu: 0.0.40
codegen_flags: <defaults>
</compile_context>

<pallas_src>
import functools

import jax
import jax.numpy as jnp
from jax.experimental import pallas as pl
from jax.experimental.pallas import tpu as pltpu

BN_EPS = 1e-5


# ----------------------------- fused kernel ----------------------------------


def _bottleneck_kernel(x_ref, w1_ref, s1_ref, b1_ref,
                       w2_ref, s0_ref, b0_ref,
                       wfc1_ref, bfc1_ref, wfc2_ref, bfc2_ref,
                       w3_ref, s3_ref, b3_ref,
                       o_ref, *, H, W):
    f32, bf16 = jnp.float32, jnp.bfloat16
    Cin = w1_ref.shape[0]
    Cw = w1_ref.shape[1]
    planes = w3_ref.shape[1]
    M = H * W

    # ---- stage 1: conv1 (1x1) + bn1 + relu ----------------------------------
    x2d = x_ref[...].reshape(M, Cin)                      # bf16 input
    t1 = jnp.dot(x2d, w1_ref[...], preferred_element_type=f32)
    t1 = jnp.maximum(t1 * s1_ref[...] + b1_ref[...], 0.0).astype(bf16)   # (M, Cw)

    # ---- 3x3 conv (stride 1, pad 1), scratch-free ----------------------------
    # Horizontal taps: flat +/-1 shifts of the row-major (M, Cw) frame; the
    # element that wraps across a row boundary lands exactly in the column
    # that must be zero-padded, so a single column mask makes it exact.
    col = jax.lax.broadcasted_iota(jnp.int32, (M, 1), 0) % W
    zrow1 = jnp.zeros((1, Cw), bf16)
    left = jnp.where(col == 0, jnp.zeros_like(t1),
                     jnp.concatenate([zrow1, t1[:M - 1, :]], axis=0))     # reads w-1
    right = jnp.where(col == W - 1, jnp.zeros_like(t1),
                      jnp.concatenate([t1[1:, :], zrow1], axis=0))        # reads w+1
    hcols = jnp.concatenate([left, t1, right], axis=1)                    # (M, 3*Cw)

    # Vertical taps: whole-row shifts (exact multiples of W) with zero fill;
    # one K=3*Cw matmul per dy (w2 rows are ordered dy-major / dx-minor).
    zrowsW = jnp.zeros((W, 3 * Cw), bf16)
    up = jnp.concatenate([zrowsW, hcols[:M - W, :]], axis=0)              # reads h-1
    down = jnp.concatenate([hcols[W:, :], zrowsW], axis=0)                # reads h+1
    acc = jnp.dot(up, w2_ref[0:3 * Cw, :], preferred_element_type=f32)
    acc = acc + jnp.dot(hcols, w2_ref[3 * Cw:6 * Cw, :],
                        preferred_element_type=f32)
    acc = acc + jnp.dot(down, w2_ref[6 * Cw:9 * Cw, :],
                        preferred_element_type=f32)

    # bn0 + relu (f32 epilogue)
    t = jnp.maximum(acc * s0_ref[...] + b0_ref[...], 0.0)                 # (M, Cw)

    # ---- split attention (radix=1): GAP -> fc1 -> relu -> fc2 -> sigmoid ----
    gap = jnp.mean(t, axis=0, keepdims=True)                              # (1, Cw)
    g = jnp.dot(gap.astype(bf16), wfc1_ref[...], preferred_element_type=f32)
    g = jnp.maximum(g + bfc1_ref[...], 0.0)
    a = jnp.dot(g.astype(bf16), wfc2_ref[...], preferred_element_type=f32)
    a = a + bfc2_ref[...]
    a = 0.5 * (jnp.tanh(0.5 * a) + 1.0)                  # stable sigmoid (EUP)
    out2 = (t * a).astype(bf16)                          # broadcast over rows

    # ---- conv3 (1x1) + bn3 + residual + relu ---------------------------------
    out3 = jnp.dot(out2, w3_ref[...], preferred_element_type=f32)
    out3 = out3 * s3_ref[...] + b3_ref[...]
    out = jnp.maximum(out3 + x2d.astype(f32), 0.0)       # residual in f32
    o_ref[...] = out.reshape(1, H, W, planes).astype(o_ref.dtype)


# ----------------------------- wrappers ---------------------------------------


def _vmem_limit_bytes(H, W, Cin, Cw, Cinter, planes):
    """Rough per-step VMEM bound (double-buffered I/O + weights + temporaries)."""
    bf, f4 = 2, 4
    M = H * W
    io = 2 * M * Cin * bf + 2 * M * planes * bf
    wts = 2 * ((Cin * Cw + 9 * Cw * Cw + Cw * Cinter + Cinter * Cw
                + Cw * planes) * bf
               + (6 * Cw + 2 * Cinter + 2 * planes) * f4)
    tmp = (8 * M * Cw + 4 * M * 3 * Cw) * bf + 4 * M * Cw * f4
    est = io + wts + tmp
    return int(min(64 << 20, max(8 << 20, 2 * est)))


def bottleneck_forward_nhwc(x_nhwc, p):
    """x_nhwc: (N, H, W, Cin).  Returns (N, H, W, planes) bf16."""
    N, H, W, Cin = x_nhwc.shape
    Cw = p["w1"].shape[1]
    planes = p["w3"].shape[1]
    Cinter = p["wfc1"].shape[1]
    assert Cin == planes, "residual add requires inplanes == planes (downsample=None)"

    x_bf16 = x_nhwc.astype(jnp.bfloat16)

    def full(shape):
        return pl.BlockSpec(shape, lambda n, _s=shape: (0,) * len(_s))

    kernel = functools.partial(_bottleneck_kernel, H=H, W=W)

    return pl.pallas_call(
        kernel,
        out_shape=jax.ShapeDtypeStruct((N, H, W, planes), jnp.bfloat16),
        grid=(N,),
        in_specs=[
            pl.BlockSpec((1, H, W, Cin), lambda n: (n, 0, 0, 0)),
            full((Cin, Cw)),
            full((1, Cw)), full((1, Cw)),
            full((9 * Cw, Cw)),
            full((1, Cw)), full((1, Cw)),
            full((Cw, Cinter)), full((1, Cinter)),
            full((Cinter, Cw)), full((1, Cw)),
            full((Cw, planes)), full((1, planes)), full((1, planes)),
        ],
        out_specs=pl.BlockSpec((1, H, W, planes), lambda n: (n, 0, 0, 0)),
        compiler_params=pltpu.CompilerParams(
            dimension_semantics=("parallel",),
            vmem_limit_bytes=_vmem_limit_bytes(H, W, Cin, Cw, Cinter, planes)),
    )(x_bf16, p["w1"], p["bn1_scale"], p["bn1_bias"],
      p["w2"], p["bn0_scale"], p["bn0_bias"],
      p["wfc1"], p["bfc1"], p["wfc2"], p["bfc2"],
      p["w3"], p["bn3_scale"], p["bn3_bias"])


def bottleneck_forward(x_nchw, p):
    """PyTorch-layout boundary: (N, Cin, H, W) f32 -> (N, planes, H, W) f32."""
    x = jnp.transpose(x_nchw, (0, 2, 3, 1))
    out = bottleneck_forward_nhwc(x, p)
    return jnp.transpose(out.astype(jnp.float32), (0, 3, 1, 2))


# -------------------------- parameter construction ----------------------------


def _fold_bn(key, c):
    k1, k2, k3, k4 = jax.random.split(key, 4)
    gamma = 1.0 + 0.1 * jax.random.normal(k1, (c,), jnp.float32)
    beta = 0.1 * jax.random.normal(k2, (c,), jnp.float32)
    mean = 0.1 * jax.random.normal(k3, (c,), jnp.float32)
    var = jax.random.uniform(k4, (c,), jnp.float32, 0.5, 1.5)
    scale = gamma / jnp.sqrt(var + BN_EPS)
    bias = beta - mean * scale
    return scale.reshape(1, c), bias.reshape(1, c)


def make_params(key, inplanes, planes, bottleneck_width=64, cardinality=1,
                radix=1, reduction_factor=4):
    group_width = int(planes * (bottleneck_width / 64.0)) * cardinality
    inter = max(group_width * radix // reduction_factor, 32)
    keys = jax.random.split(key, 10)
    bf16 = jnp.bfloat16

    p = {}
    # conv1: 1x1, inplanes -> group_width (no bias); stored (Cin, Cw), bf16
    p["w1"] = (0.05 * jax.random.normal(keys[0], (inplanes, group_width),
                                        jnp.float32)).astype(bf16)
    p["bn1_scale"], p["bn1_bias"] = _fold_bn(keys[1], group_width)

    # SplAtConv2d.conv: 3x3 group_width -> group_width*radix (no bias)
    # stored tap-major (dy*3+dx, Cin, Cout) and flattened to (9*Cin, Cout)
    w2 = 0.05 * jax.random.normal(keys[2], (9, group_width, group_width), jnp.float32)
    p["w2"] = w2.reshape(9 * group_width, group_width).astype(bf16)
    p["bn0_scale"], p["bn0_bias"] = _fold_bn(keys[3], group_width)

    # fc1: 1x1 conv group_width -> inter (with bias), followed by bn1s (folded in)
    wfc1 = 0.05 * jax.random.normal(keys[4], (group_width, inter), jnp.float32)
    bfc1 = 0.05 * jax.random.normal(keys[5], (inter,), jnp.float32)
    s1s, o1s = _fold_bn(keys[6], inter)
    p["wfc1"] = (wfc1 * s1s).astype(bf16)
    p["bfc1"] = bfc1.reshape(1, inter) * s1s + o1s

    # fc2: 1x1 conv inter -> group_width*radix (with bias)
    p["wfc2"] = (0.05 * jax.random.normal(keys[7], (inter, group_width),
                                          jnp.float32)).astype(bf16)
    p["bfc2"] = 0.05 * jax.random.normal(keys[8], (group_width,),
                                         jnp.float32).reshape(1, group_width)

    # conv3: 1x1, group_width -> planes (no bias)
    kw3, kbn3 = jax.random.split(keys[9])
    p["w3"] = (0.05 * jax.random.normal(kw3, (group_width, planes),
                                        jnp.float32)).astype(bf16)
    p["bn3_scale"], p["bn3_bias"] = _fold_bn(kbn3, planes)
    return p


# ----------------------------- pure-JAX reference -----------------------------


def bottleneck_reference(x_nchw, p):
    """Same math with the same bf16-operand / f32-accumulate / bf16-output recipe."""
    f32, bf16 = jnp.float32, jnp.bfloat16
    x = jnp.transpose(x_nchw, (0, 2, 3, 1)).astype(bf16)       # NHWC, bf16 boundary
    N, H, W, Cin = x.shape
    Cw = p["w1"].shape[1]

    def mm(a, b):
        return jnp.dot(a.astype(bf16), b, preferred_element_type=f32)

    t1 = mm(x.reshape(N * H * W, Cin), p["w1"])
    t1 = jnp.maximum(t1 * p["bn1_scale"] + p["bn1_bias"], 0.0)
    t1 = t1.reshape(N, H, W, Cw).astype(bf16)

    xpad = jnp.pad(t1, ((0, 0), (1, 1), (1, 1), (0, 0)))
    w2 = p["w2"].reshape(9, Cw, Cw)
    acc = jnp.zeros((N, H, W, Cw), f32)
    for dy in range(3):
        for dx in range(3):
            win = xpad[:, dy:dy + H, dx:dx + W, :].reshape(N * H * W, Cw)
            acc = acc + jnp.dot(win, w2[dy * 3 + dx],
                                preferred_element_type=f32).reshape(N, H, W, Cw)
    t = jnp.maximum(acc * p["bn0_scale"] + p["bn0_bias"], 0.0)

    gap = jnp.mean(t, axis=(1, 2))                            # (N, Cw)
    g = jnp.maximum(mm(gap, p["wfc1"]) + p["bfc1"], 0.0)
    a = mm(g, p["wfc2"]) + p["bfc2"]
    a = 0.5 * (jnp.tanh(0.5 * a) + 1.0)
    out2 = t * a[:, None, None, :]

    out3 = mm(out2.reshape(N * H * W, Cw), p["w3"])
    out3 = (out3 * p["bn3_scale"] + p["bn3_bias"]).reshape(N, H, W, -1)
    out = jnp.maximum(out3 + x.astype(f32), 0.0)
    out = out.astype(bf16).astype(f32)                        # match kernel bf16 output
    return jnp.transpose(out, (0, 3, 1, 2))


# ----------------------------------- main --------------------------------------


if __name__ == "__main__":
    key = jax.random.PRNGKey(0)
    k_x, k_p = jax.random.split(key)

    # planes = group_width = 128 -> full-lane (128-wide) matmul RHS and output
    # stores; inplanes == planes so the identity residual applies.
    N, C, H, W = 2, 128, 8, 8
    x = jax.random.normal(k_x, (N, C, H, W), jnp.float32)
    params = make_params(k_p, inplanes=C, planes=C)

    fwd = jax.jit(bottleneck_forward)
    out = fwd(x, params)
    jax.block_until_ready(out)

    assert out.shape == (N, C, H, W), out.shape
    assert bool(jnp.all(jnp.isfinite(out))), "non-finite output"

    ref = bottleneck_reference(x, params)
    err = float(jnp.max(jnp.abs(out - ref) / (1.0 + jnp.abs(ref))))
    assert err < 2.5e-2, f"scaled error vs reference too large: {err}"

    print("KERNEL_OK")
</pallas_src>

<mosaic_0001>
module attributes {stable_mosaic.version = 11 : i64} {
  func.func @_bottleneck_kernel(%arg0: i32, %arg1: memref<1x8x8x128xbf16, #tpu.memory_space<vmem>>, %arg2: memref<128x128xbf16, #tpu.memory_space<vmem>>, %arg3: memref<1x128xf32, #tpu.memory_space<vmem>>, %arg4: memref<1x128xf32, #tpu.memory_space<vmem>>, %arg5: memref<1152x128xbf16, #tpu.memory_space<vmem>>, %arg6: memref<1x128xf32, #tpu.memory_space<vmem>>, %arg7: memref<1x128xf32, #tpu.memory_space<vmem>>, %arg8: memref<128x32xbf16, #tpu.memory_space<vmem>>, %arg9: memref<1x32xf32, #tpu.memory_space<vmem>>, %arg10: memref<32x128xbf16, #tpu.memory_space<vmem>>, %arg11: memref<1x128xf32, #tpu.memory_space<vmem>>, %arg12: memref<128x128xbf16, #tpu.memory_space<vmem>>, %arg13: memref<1x128xf32, #tpu.memory_space<vmem>>, %arg14: memref<1x128xf32, #tpu.memory_space<vmem>>, %arg15: memref<1x8x8x128xbf16, #tpu.memory_space<vmem>>) attributes {dimension_semantics = [#tpu.dimension_semantics<parallel>], iteration_bounds = array<i64: 2>, scalar_prefetch = 0 : i64, scratch_operands = 0 : i64, tpu.core_type = #tpu.core_type<tc>, window_params = [{transform_indices = @transform_0, window_bounds = array<i64: 1, 8, 8, 128>}, {pipeline_mode = #tpu.pipeline_mode<synchronous>, transform_indices = @transform_1, window_bounds = array<i64: 128, 128>}, {pipeline_mode = #tpu.pipeline_mode<synchronous>, transform_indices = @transform_2, window_bounds = array<i64: 1, 128>}, {pipeline_mode = #tpu.pipeline_mode<synchronous>, transform_indices = @transform_3, window_bounds = array<i64: 1, 128>}, {pipeline_mode = #tpu.pipeline_mode<synchronous>, transform_indices = @transform_4, window_bounds = array<i64: 1152, 128>}, {pipeline_mode = #tpu.pipeline_mode<synchronous>, transform_indices = @transform_5, window_bounds = array<i64: 1, 128>}, {pipeline_mode = #tpu.pipeline_mode<synchronous>, transform_indices = @transform_6, window_bounds = array<i64: 1, 128>}, {pipeline_mode = #tpu.pipeline_mode<synchronous>, transform_indices = @transform_7, window_bounds = array<i64: 128, 32>}, {pipeline_mode = #tpu.pipeline_mode<synchronous>, transform_indices = @transform_8, window_bounds = array<i64: 1, 32>}, {pipeline_mode = #tpu.pipeline_mode<synchronous>, transform_indices = @transform_9, window_bounds = array<i64: 32, 128>}, {pipeline_mode = #tpu.pipeline_mode<synchronous>, transform_indices = @transform_10, window_bounds = array<i64: 1, 128>}, {pipeline_mode = #tpu.pipeline_mode<synchronous>, transform_indices = @transform_11, window_bounds = array<i64: 128, 128>}, {pipeline_mode = #tpu.pipeline_mode<synchronous>, transform_indices = @transform_12, window_bounds = array<i64: 1, 128>}, {pipeline_mode = #tpu.pipeline_mode<synchronous>, transform_indices = @transform_13, window_bounds = array<i64: 1, 128>}, {transform_indices = @transform_14, window_bounds = array<i64: 1, 8, 8, 128>}]} {
    %c0 = arith.constant 0 : index
    %c0_0 = arith.constant 0 : index
    %c0_1 = arith.constant 0 : index
    %c0_2 = arith.constant 0 : index
    %0 = vector.load %arg1[%c0, %c0_0, %c0_1, %c0_2] : memref<1x8x8x128xbf16, #tpu.memory_space<vmem>>, vector<1x8x8x128xbf16>
    %1 = vector.shape_cast %0 : vector<1x8x8x128xbf16> to vector<64x128xbf16>
    %c0_3 = arith.constant 0 : index
    %c0_4 = arith.constant 0 : index
    %2 = vector.load %arg2[%c0_3, %c0_4] : memref<128x128xbf16, #tpu.memory_space<vmem>>, vector<128x128xbf16>
    %cst = arith.constant dense<0.000000e+00> : vector<64x128xf32>
    %3 = tpu.matmul %1, %2, %cst {dimension_numbers = #tpu.dot_dimension_numbers<[1], [0], [0], [1], [0, 0, 1, 1], [], []>} : vector<64x128xbf16>, vector<128x128xbf16>, vector<64x128xf32> -> vector<64x128xf32>
    %c0_5 = arith.constant 0 : index
    %c0_6 = arith.constant 0 : index
    %4 = vector.load %arg3[%c0_5, %c0_6] : memref<1x128xf32, #tpu.memory_space<vmem>>, vector<1x128xf32>
    %5 = vector.broadcast %4 : vector<1x128xf32> to vector<64x128xf32>
    %6 = arith.mulf %3, %5 : vector<64x128xf32>
    %c0_7 = arith.constant 0 : index
    %c0_8 = arith.constant 0 : index
    %7 = vector.load %arg4[%c0_7, %c0_8] : memref<1x128xf32, #tpu.memory_space<vmem>>, vector<1x128xf32>
    %8 = vector.broadcast %7 : vector<1x128xf32> to vector<64x128xf32>
    %9 = arith.addf %6, %8 : vector<64x128xf32>
    %cst_9 = arith.constant 0.000000e+00 : f32
    %10 = vector.broadcast %cst_9 : f32 to vector<64x128xf32>
    %11 = arith.maximumf %9, %10 : vector<64x128xf32>
    %12 = arith.truncf %11 : vector<64x128xf32> to vector<64x128xbf16>
    %13 = tpu.iota {dimensions = array<i32: 0>} : vector<64x1xi32>
    %c8_i32 = arith.constant 8 : i32
    %c0_i32 = arith.constant 0 : i32
    %14 = arith.cmpi eq, %c8_i32, %c0_i32 : i32
    %c1_i32 = arith.constant 1 : i32
    %15 = arith.select %14, %c1_i32, %c8_i32 : i32
    %16 = vector.broadcast %15 : i32 to vector<64x1xi32>
    %17 = arith.remsi %13, %16 : vector<64x1xi32>
    %c0_i32_10 = arith.constant 0 : i32
    %18 = vector.broadcast %c0_i32_10 : i32 to vector<64x1xi32>
    %19 = arith.cmpi ne, %17, %18 : vector<64x1xi32>
    %c0_i32_11 = arith.constant 0 : i32
    %20 = vector.broadcast %c0_i32_11 : i32 to vector<64x1xi32>
    %21 = arith.cmpi slt, %17, %20 : vector<64x1xi32>
    %c0_i32_12 = arith.constant 0 : i32
    %22 = arith.cmpi slt, %15, %c0_i32_12 : i32
    %23 = vector.broadcast %22 : i1 to vector<64x1xi1>
    %24 = vector.broadcast %23 : vector<64x1xi1> to vector<64x1xi1>
    %25 = arith.xori %21, %24 : vector<64x1xi1>
    %26 = arith.andi %25, %19 : vector<64x1xi1>
    %27 = vector.broadcast %15 : i32 to vector<64x1xi32>
    %28 = arith.addi %17, %27 : vector<64x1xi32>
    %29 = arith.select %26, %28, %17 : vector<64x1xi1>, vector<64x1xi32>
    %cst_13 = arith.constant 0.000000e+00 : bf16
    %30 = vector.broadcast %cst_13 : bf16 to vector<1x128xbf16>
    %c0_i32_14 = arith.constant 0 : i32
    %31 = vector.broadcast %c0_i32_14 : i32 to vector<64x1xi32>
    %32 = arith.cmpi eq, %29, %31 : vector<64x1xi32>
    %cst_15 = arith.constant 0.000000e+00 : bf16
    %33 = vector.broadcast %cst_15 : bf16 to vector<64x128xbf16>
    %34 = vector.extract_strided_slice %12 {offsets = [0, 0], sizes = [63, 128], strides = [1, 1]} : vector<64x128xbf16> to vector<63x128xbf16>
    %35 = tpu.concatenate %30, %34 in 0 : vector<1x128xbf16>, vector<63x128xbf16> -> vector<64x128xbf16>
    %36 = vector.shape_cast %32 : vector<64x1xi1> to vector<64x1xi1>
    %37 = vector.broadcast %36 : vector<64x1xi1> to vector<64x128xi1>
    %38 = arith.select %37, %33, %35 : vector<64x128xi1>, vector<64x128xbf16>
    %c7_i32 = arith.constant 7 : i32
    %39 = vector.broadcast %c7_i32 : i32 to vector<64x1xi32>
    %40 = arith.cmpi eq, %29, %39 : vector<64x1xi32>
    %cst_16 = arith.constant 0.000000e+00 : bf16
    %41 = vector.broadcast %cst_16 : bf16 to vector<64x128xbf16>
    %42 = vector.extract_strided_slice %12 {offsets = [1, 0], sizes = [63, 128], strides = [1, 1]} : vector<64x128xbf16> to vector<63x128xbf16>
    %43 = tpu.concatenate %42, %30 in 0 : vector<63x128xbf16>, vector<1x128xbf16> -> vector<64x128xbf16>
    %44 = vector.shape_cast %40 : vector<64x1xi1> to vector<64x1xi1>
    %45 = vector.broadcast %44 : vector<64x1xi1> to vector<64x128xi1>
    %46 = arith.select %45, %41, %43 : vector<64x128xi1>, vector<64x128xbf16>
    %47 = tpu.concatenate %38, %12, %46 in 1 : vector<64x128xbf16>, vector<64x128xbf16>, vector<64x128xbf16> -> vector<64x384xbf16>
    %cst_17 = arith.constant 0.000000e+00 : bf16
    %48 = vector.broadcast %cst_17 : bf16 to vector<8x384xbf16>
    %49 = vector.extract_strided_slice %47 {offsets = [0, 0], sizes = [56, 384], strides = [1, 1]} : vector<64x384xbf16> to vector<56x384xbf16>
    %50 = tpu.concatenate %48, %49 in 0 : vector<8x384xbf16>, vector<56x384xbf16> -> vector<64x384xbf16>
    %51 = vector.extract_strided_slice %47 {offsets = [8, 0], sizes = [56, 384], strides = [1, 1]} : vector<64x384xbf16> to vector<56x384xbf16>
    %52 = tpu.concatenate %51, %48 in 0 : vector<56x384xbf16>, vector<8x384xbf16> -> vector<64x384xbf16>
    %c0_18 = arith.constant 0 : index
    %c0_19 = arith.constant 0 : index
    %53 = vector.load %arg5[%c0_18, %c0_19] : memref<1152x128xbf16, #tpu.memory_space<vmem>>, vector<384x128xbf16>
    %cst_20 = arith.constant dense<0.000000e+00> : vector<64x128xf32>
    %54 = tpu.matmul %50, %53, %cst_20 {dimension_numbers = #tpu.dot_dimension_numbers<[1], [0], [0], [1], [0, 0, 1, 1], [], []>} : vector<64x384xbf16>, vector<384x128xbf16>, vector<64x128xf32> -> vector<64x128xf32>
    %c384 = arith.constant 384 : index
    %c0_21 = arith.constant 0 : index
    %55 = vector.load %arg5[%c384, %c0_21] : memref<1152x128xbf16, #tpu.memory_space<vmem>>, vector<384x128xbf16>
    %cst_22 = arith.constant dense<0.000000e+00> : vector<64x128xf32>
    %56 = tpu.matmul %47, %55, %cst_22 {dimension_numbers = #tpu.dot_dimension_numbers<[1], [0], [0], [1], [0, 0, 1, 1], [], []>} : vector<64x384xbf16>, vector<384x128xbf16>, vector<64x128xf32> -> vector<64x128xf32>
    %57 = arith.addf %54, %56 : vector<64x128xf32>
    %c768 = arith.constant 768 : index
    %c0_23 = arith.constant 0 : index
    %58 = vector.load %arg5[%c768, %c0_23] : memref<1152x128xbf16, #tpu.memory_space<vmem>>, vector<384x128xbf16>
    %cst_24 = arith.constant dense<0.000000e+00> : vector<64x128xf32>
    %59 = tpu.matmul %52, %58, %cst_24 {dimension_numbers = #tpu.dot_dimension_numbers<[1], [0], [0], [1], [0, 0, 1, 1], [], []>} : vector<64x384xbf16>, vector<384x128xbf16>, vector<64x128xf32> -> vector<64x128xf32>
    %60 = arith.addf %57, %59 : vector<64x128xf32>
    %c0_25 = arith.constant 0 : index
    %c0_26 = arith.constant 0 : index
    %61 = vector.load %arg6[%c0_25, %c0_26] : memref<1x128xf32, #tpu.memory_space<vmem>>, vector<1x128xf32>
    %62 = vector.broadcast %61 : vector<1x128xf32> to vector<64x128xf32>
    %63 = arith.mulf %60, %62 : vector<64x128xf32>
    %c0_27 = arith.constant 0 : index
    %c0_28 = arith.constant 0 : index
    %64 = vector.load %arg7[%c0_27, %c0_28] : memref<1x128xf32, #tpu.memory_space<vmem>>, vector<1x128xf32>
    %65 = vector.broadcast %64 : vector<1x128xf32> to vector<64x128xf32>
    %66 = arith.addf %63, %65 : vector<64x128xf32>
    %cst_29 = arith.constant 0.000000e+00 : f32
    %67 = vector.broadcast %cst_29 : f32 to vector<64x128xf32>
    %68 = arith.maximumf %66, %67 : vector<64x128xf32>
    %cst_30 = arith.constant dense<0.000000e+00> : vector<128xf32>
    %69 = vector.multi_reduction <add>, %68, %cst_30 [0] : vector<64x128xf32> to vector<128xf32>
    %70 = vector.shape_cast %69 : vector<128xf32> to vector<1x128xf32>
    %cst_31 = arith.constant 6.400000e+01 : f32
    %71 = vector.broadcast %cst_31 : f32 to vector<1x128xf32>
    %72 = arith.divf %70, %71 : vector<1x128xf32>
    %73 = arith.truncf %72 : vector<1x128xf32> to vector<1x128xbf16>
    %c0_32 = arith.constant 0 : index
    %c0_33 = arith.constant 0 : index
    %74 = vector.load %arg8[%c0_32, %c0_33] : memref<128x32xbf16, #tpu.memory_space<vmem>>, vector<128x32xbf16>
    %cst_34 = arith.constant dense<0.000000e+00> : vector<1x32xf32>
    %75 = tpu.matmul %73, %74, %cst_34 {dimension_numbers = #tpu.dot_dimension_numbers<[1], [0], [0], [1], [0, 0, 1, 1], [], []>} : vector<1x128xbf16>, vector<128x32xbf16>, vector<1x32xf32> -> vector<1x32xf32>
    %c0_35 = arith.constant 0 : index
    %c0_36 = arith.constant 0 : index
    %76 = vector.load %arg9[%c0_35, %c0_36] : memref<1x32xf32, #tpu.memory_space<vmem>>, vector<1x32xf32>
    %77 = arith.addf %75, %76 : vector<1x32xf32>
    %cst_37 = arith.constant 0.000000e+00 : f32
    %78 = vector.broadcast %cst_37 : f32 to vector<1x32xf32>
    %79 = arith.maximumf %77, %78 : vector<1x32xf32>
    %80 = arith.truncf %79 : vector<1x32xf32> to vector<1x32xbf16>
    %c0_38 = arith.constant 0 : index
    %c0_39 = arith.constant 0 : index
    %81 = vector.load %arg10[%c0_38, %c0_39] : memref<32x128xbf16, #tpu.memory_space<vmem>>, vector<32x128xbf16>
    %cst_40 = arith.constant dense<0.000000e+00> : vector<1x128xf32>
    %82 = tpu.matmul %80, %81, %cst_40 {dimension_numbers = #tpu.dot_dimension_numbers<[1], [0], [0], [1], [0, 0, 1, 1], [], []>} : vector<1x32xbf16>, vector<32x128xbf16>, vector<1x128xf32> -> vector<1x128xf32>
    %c0_41 = arith.constant 0 : index
    %c0_42 = arith.constant 0 : index
    %83 = vector.load %arg11[%c0_41, %c0_42] : memref<1x128xf32, #tpu.memory_space<vmem>>, vector<1x128xf32>
    %84 = arith.addf %82, %83 : vector<1x128xf32>
    %cst_43 = arith.constant 5.000000e-01 : f32
    %85 = vector.broadcast %cst_43 : f32 to vector<1x128xf32>
    %86 = arith.mulf %85, %84 : vector<1x128xf32>
    %87 = math.tanh %86 : vector<1x128xf32>
    %cst_44 = arith.constant 1.000000e+00 : f32
    %88 = vector.broadcast %cst_44 : f32 to vector<1x128xf32>
    %89 = arith.addf %87, %88 : vector<1x128xf32>
    %cst_45 = arith.constant 5.000000e-01 : f32
    %90 = vector.broadcast %cst_45 : f32 to vector<1x128xf32>
    %91 = arith.mulf %90, %89 : vector<1x128xf32>
    %92 = vector.broadcast %91 : vector<1x128xf32> to vector<64x128xf32>
    %93 = arith.mulf %68, %92 : vector<64x128xf32>
    %94 = arith.truncf %93 : vector<64x128xf32> to vector<64x128xbf16>
    %c0_46 = arith.constant 0 : index
    %c0_47 = arith.constant 0 : index
    %95 = vector.load %arg12[%c0_46, %c0_47] : memref<128x128xbf16, #tpu.memory_space<vmem>>, vector<128x128xbf16>
    %cst_48 = arith.constant dense<0.000000e+00> : vector<64x128xf32>
    %96 = tpu.matmul %94, %95, %cst_48 {dimension_numbers = #tpu.dot_dimension_numbers<[1], [0], [0], [1], [0, 0, 1, 1], [], []>} : vector<64x128xbf16>, vector<128x128xbf16>, vector<64x128xf32> -> vector<64x128xf32>
    %c0_49 = arith.constant 0 : index
    %c0_50 = arith.constant 0 : index
    %97 = vector.load %arg13[%c0_49, %c0_50] : memref<1x128xf32, #tpu.memory_space<vmem>>, vector<1x128xf32>
    %98 = vector.broadcast %97 : vector<1x128xf32> to vector<64x128xf32>
    %99 = arith.mulf %96, %98 : vector<64x128xf32>
    %c0_51 = arith.constant 0 : index
    %c0_52 = arith.constant 0 : index
    %100 = vector.load %arg14[%c0_51, %c0_52] : memref<1x128xf32, #tpu.memory_space<vmem>>, vector<1x128xf32>
    %101 = vector.broadcast %100 : vector<1x128xf32> to vector<64x128xf32>
    %102 = arith.addf %99, %101 : vector<64x128xf32>
    %103 = arith.extf %1 : vector<64x128xbf16> to vector<64x128xf32>
    %104 = arith.addf %102, %103 : vector<64x128xf32>
    %cst_53 = arith.constant 0.000000e+00 : f32
    %105 = vector.broadcast %cst_53 : f32 to vector<64x128xf32>
    %106 = arith.maximumf %104, %105 : vector<64x128xf32>
    %107 = vector.shape_cast %106 : vector<64x128xf32> to vector<1x8x8x128xf32>
    %108 = arith.truncf %107 : vector<1x8x8x128xf32> to vector<1x8x8x128xbf16>
    %c0_54 = arith.constant 0 : index
    %c0_55 = arith.constant 0 : index
    %c0_56 = arith.constant 0 : index
    %c0_57 = arith.constant 0 : index
    %109 = vector.load %arg15[%c0_54, %c0_55, %c0_56, %c0_57] : memref<1x8x8x128xbf16, #tpu.memory_space<vmem>>, vector<1x8x8x128xbf16>
    tpu.vector_store %arg15[%c0_54, %c0_55, %c0_56, %c0_57], %108 {strides = array<i32>} : memref<1x8x8x128xbf16, #tpu.memory_space<vmem>>, vector<1x8x8x128xbf16>,
    return
  }
  func.func @transform_0(%arg0: i32) -> (i32, i32, i32, i32) {
    %c0_i32 = arith.constant 0 : i32
    %c0_i32_0 = arith.constant 0 : i32
    %c0_i32_1 = arith.constant 0 : i32
    %c0_i32_2 = arith.constant 0 : i32
    return %arg0, %c0_i32, %c0_i32_0, %c0_i32_1 : i32, i32, i32, i32
  }
  func.func @transform_1(%arg0: i32) -> (i32, i32) {
    %c0_i32 = arith.constant 0 : i32
    %c0_i32_0 = arith.constant 0 : i32
    %c0_i32_1 = arith.constant 0 : i32
    return %c0_i32, %c0_i32_0 : i32, i32
  }
  func.func @transform_2(%arg0: i32) -> (i32, i32) {
    %c0_i32 = arith.constant 0 : i32
    %c0_i32_0 = arith.constant 0 : i32
    %c0_i32_1 = arith.constant 0 : i32
    return %c0_i32, %c0_i32_0 : i32, i32
  }
  func.func @transform_3(%arg0: i32) -> (i32, i32) {
    %c0_i32 = arith.constant 0 : i32
    %c0_i32_0 = arith.constant 0 : i32
    %c0_i32_1 = arith.constant 0 : i32
    return %c0_i32, %c0_i32_0 : i32, i32
  }
  func.func @transform_4(%arg0: i32) -> (i32, i32) {
    %c0_i32 = arith.constant 0 : i32
    %c0_i32_0 = arith.constant 0 : i32
    %c0_i32_1 = arith.constant 0 : i32
    return %c0_i32, %c0_i32_0 : i32, i32
  }
  func.func @transform_5(%arg0: i32) -> (i32, i32) {
    %c0_i32 = arith.constant 0 : i32
    %c0_i32_0 = arith.constant 0 : i32
    %c0_i32_1 = arith.constant 0 : i32
    return %c0_i32, %c0_i32_0 : i32, i32
  }
  func.func @transform_6(%arg0: i32) -> (i32, i32) {
    %c0_i32 = arith.constant 0 : i32
    %c0_i32_0 = arith.constant 0 : i32
    %c0_i32_1 = arith.constant 0 : i32
    return %c0_i32, %c0_i32_0 : i32, i32
  }
  func.func @transform_7(%arg0: i32) -> (i32, i32) {
    %c0_i32 = arith.constant 0 : i32
    %c0_i32_0 = arith.constant 0 : i32
    %c0_i32_1 = arith.constant 0 : i32
    return %c0_i32, %c0_i32_0 : i32, i32
  }
  func.func @transform_8(%arg0: i32) -> (i32, i32) {
    %c0_i32 = arith.constant 0 : i32
    %c0_i32_0 = arith.constant 0 : i32
    %c0_i32_1 = arith.constant 0 : i32
    return %c0_i32, %c0_i32_0 : i32, i32
  }
  func.func @transform_9(%arg0: i32) -> (i32, i32) {
    %c0_i32 = arith.constant 0 : i32
    %c0_i32_0 = arith.constant 0 : i32
    %c0_i32_1 = arith.constant 0 : i32
    return %c0_i32, %c0_i32_0 : i32, i32
  }
  func.func @transform_10(%arg0: i32) -> (i32, i32) {
    %c0_i32 = arith.constant 0 : i32
    %c0_i32_0 = arith.constant 0 : i32
    %c0_i32_1 = arith.constant 0 : i32
    return %c0_i32, %c0_i32_0 : i32, i32
  }
  func.func @transform_11(%arg0: i32) -> (i32, i32) {
    %c0_i32 = arith.constant 0 : i32
    %c0_i32_0 = arith.constant 0 : i32
    %c0_i32_1 = arith.constant 0 : i32
    return %c0_i32, %c0_i32_0 : i32, i32
  }
  func.func @transform_12(%arg0: i32) -> (i32, i32) {
    %c0_i32 = arith.constant 0 : i32
    %c0_i32_0 = arith.constant 0 : i32
    %c0_i32_1 = arith.constant 0 : i32
    return %c0_i32, %c0_i32_0 : i32, i32
  }
  func.func @transform_13(%arg0: i32) -> (i32, i32) {
    %c0_i32 = arith.constant 0 : i32
    %c0_i32_0 = arith.constant 0 : i32
    %c0_i32_1 = arith.constant 0 : i32
    return %c0_i32, %c0_i32_0 : i32, i32
  }
  func.func @transform_14(%arg0: i32) -> (i32, i32, i32, i32) {
    %c0_i32 = arith.constant 0 : i32
    %c0_i32_0 = arith.constant 0 : i32
    %c0_i32_1 = arith.constant 0 : i32
    %c0_i32_2 = arith.constant 0 : i32
    return %arg0, %c0_i32, %c0_i32_0, %c0_i32_1 : i32, i32, i32, i32
  }
}

</mosaic_0001>

<llo_original>
// kernel: bottleneck_forward.1
$region0: #{bottleneck_forward.1}
  #allocation0 [shape = 'u32[]', space=smem, size = 0x4, offset = 0x4, fixed_abs, tag = 'smem constant byte address 0x4 - core index']
  #allocation1 [shape = 'u32[144,128]{1,0:T(1,128)}', space=vmem, size = 0x12000, scoped, tag = 'internal scratch']
  %s0 = inlined_call_operand.vmem [shape: bf16[2,8,8,128], index: 0, kind: input, shape index: {}]
  %s1 = inlined_call_operand.vmem [shape: bf16[128,128], index: 1, kind: input, shape index: {}]
  %s2 = inlined_call_operand.vmem [shape: f32[1,128], index: 2, kind: input, shape index: {}]
  %s3 = inlined_call_operand.vmem [shape: f32[1,128], index: 3, kind: input, shape index: {}]
  %s4 = inlined_call_operand.hbm [shape: bf16[1152,128], index: 4, kind: input, shape index: {}]
  %s5 = inlined_call_operand.vmem [shape: f32[1,128], index: 5, kind: input, shape index: {}]
  %s6 = inlined_call_operand.vmem [shape: f32[1,128], index: 6, kind: input, shape index: {}]
  %s7 = inlined_call_operand.vmem [shape: bf16[128,32], index: 7, kind: input, shape index: {}]
  %s8 = inlined_call_operand.vmem [shape: f32[1,32], index: 8, kind: input, shape index: {}]
  %s9 = inlined_call_operand.vmem [shape: bf16[32,128], index: 9, kind: input, shape index: {}]
  %s10 = inlined_call_operand.vmem [shape: f32[1,128], index: 10, kind: input, shape index: {}]
  %s11 = inlined_call_operand.vmem [shape: bf16[128,128], index: 11, kind: input, shape index: {}]
  %s12 = inlined_call_operand.vmem [shape: f32[1,128], index: 12, kind: input, shape index: {}]
  %s13 = inlined_call_operand.vmem [shape: f32[1,128], index: 13, kind: input, shape index: {}]
  %s14 = inlined_call_operand.vmem [shape: bf16[2,8,8,128], index: 14, kind: output, shape index: {}]
  %s15 = sld [smem:[#allocation0]]
  $region93: #{bottleneck_forward.1} parent=0
    _
  %s17 = ssub.s32 1, %s15
  %s18 = scalar_select 0, %s17, %s15
  $region1: #{bottleneck_forward.1} parent=0
    #allocation2 [shape = 'u8[294912]{0}', space=vmem, size = 0x48000, scoped, tag = 'input window, operand 4, single buffered']
    #allocation3 [shape = 's32[2]{0}', space=sflag, size = 0x8, scoped, tag = 'scoped memory for bottleneck_forward.1']
    %19 = vsyncpa [#allocation3], 0
    loop: start=0, step=1, limit=4
    $region2: #{bottleneck_forward.1} parent=1 // loop_pre_header
      _
    $region3: #{bottleneck_forward.1} parent=1 // loop_header
      %s21 = sphi 0, %s25
      %p22 = scmp.ge.s32.totalorder %s21, 4
      %s31 = sphi 0, %s33
      %s34 = sphi 0, %s31
      %s35 = sphi 0, %s34
      %s51 = sphi 0, %s35
      %s55 = sphi 0, %s55
      %s57 = sphi 0, %s55
      %s58 = sphi 0, %s57
      %s72 = sphi 0, %s58
      %s76 = sphi 0, %s76
      %s78 = sphi 0, %s76
      %s79 = sphi 0, %s78
      %s93 = sphi 0, %s79
      %s97 = sphi 0, %s97
      %s99 = sphi 0, %s97
      %s100 = sphi 0, %s99
      %s114 = sphi 0, %s100
      %s118 = sphi 0, %s118
      %s120 = sphi 0, %s118
      %s121 = sphi 0, %s120
      %s135 = sphi 0, %s121
      %s139 = sphi 0, %s139
      %s141 = sphi 0, %s139
      %s142 = sphi 0, %s141
      %s156 = sphi 0, %s142
      %s160 = sphi 0, %s160
      %s162 = sphi 0, %s160
      %s163 = sphi 0, %s162
      %s177 = sphi 0, %s163
      %s181 = sphi 0, %s181
      %s183 = sphi 0, %s181
      %s184 = sphi 0, %s183
      %s198 = sphi 0, %s184
      %s202 = sphi 0, %s202
      %s204 = sphi 0, %s202
      %s205 = sphi 0, %s204
      %s219 = sphi 0, %s205
      %s223 = sphi 0, %s223
      %s225 = sphi 0, %s223
      %s226 = sphi 0, %s225
      %s240 = sphi 0, %s226
      %s244 = sphi 0, %s244
      %s246 = sphi 0, %s244
      %s247 = sphi 0, %s246
      %s261 = sphi 0, %s247
      %s265 = sphi 0, %s265
      %s267 = sphi 0, %s265
      %s268 = sphi 0, %s267
      %s282 = sphi 0, %s268
      %s286 = sphi 0, %s286
      %s288 = sphi 0, %s286
      %s289 = sphi 0, %s288
      %s303 = sphi 0, %s289
      %s307 = sphi 0, %s307
      %s309 = sphi 0, %s307
      %s310 = sphi 0, %s309
      %s324 = sphi 0, %s310
      %s330 = sphi 0, %s332
      %s333 = sphi 0, %s330
      %s334 = sphi 0, %s333
      %s350 = sphi 0, %s334
    $region4: #{bottleneck_forward.1} parent=1 // loop_header_branch
      %24 = sbr.rel (%p22) target = $region8
    $region5: #{bottleneck_forward.1} parent=1 // loop_body
      %s26 = ssub.s32 %s21, 1
      %s27 = ssub.s32 %s21, 2
      %s28 = sadd.s32 %s21, 1
      %s29 = ssub.s32 %s21, %s28
      %p30 = scmp.eq.s32.totalorder %s29, 0
      %s32 = sadd.s32 %s31, 1
      %s33 = scalar_select %p30, %s31, %s32
      %p36 = pneg %p30
      %p37 = scmp.eq.s32.totalorder %s21, 1
      %p38 = por %p36, %p37
      %p39 = scmp.ne.s32.totalorder %s31, %s34
      %p40 = scmp.eq.s32.totalorder %s21, 0
      %p41 = por %p39, %p40
      %p42 = scmp.ne.s32.totalorder %s31, %s34
      %p43 = scmp.eq.s32.totalorder %s26, 1
      %p44 = por %p42, %p43
      %p45 = scmp.ne.s32.totalorder %s34, %s35
      %p46 = scmp.eq.s32.totalorder %s26, 0
      %p47 = por %p45, %p46
      %p48 = scmp.ne.s32.totalorder %s34, %s35
      %p49 = scmp.eq.s32.totalorder %s27, 1
      %p50 = por %p48, %p49
      %p52 = scmp.ne.s32.totalorder %s35, %s51
      %p53 = scmp.eq.s32.totalorder %s27, 0
      %p54 = por %p52, %p53
      %s56 = sadd.s32 %s55, 1
      %p59 = scmp.eq.s32.totalorder %s21, 1
      %p60 = scmp.ne.s32.totalorder %s55, %s57
      %p61 = scmp.eq.s32.totalorder %s21, 0
      %p62 = por %p60, %p61
      %p63 = scmp.ne.s32.totalorder %s55, %s57
      %p64 = scmp.eq.s32.totalorder %s26, 1
      %p65 = por %p63, %p64
      %p66 = scmp.ne.s32.totalorder %s57, %s58
      %p67 = scmp.eq.s32.totalorder %s26, 0
      %p68 = por %p66, %p67
      %p69 = scmp.ne.s32.totalorder %s57, %s58
      %p70 = scmp.eq.s32.totalorder %s27, 1
      %p71 = por %p69, %p70
      %p73 = scmp.ne.s32.totalorder %s58, %s72
      %p74 = scmp.eq.s32.totalorder %s27, 0
      %p75 = por %p73, %p74
      %s77 = sadd.s32 %s76, 1
      %p80 = scmp.eq.s32.totalorder %s21, 1
      %p81 = scmp.ne.s32.totalorder %s76, %s78
      %p82 = scmp.eq.s32.totalorder %s21, 0
      %p83 = por %p81, %p82
      %p84 = scmp.ne.s32.totalorder %s76, %s78
      %p85 = scmp.eq.s32.totalorder %s26, 1
      %p86 = por %p84, %p85
      %p87 = scmp.ne.s32.totalorder %s78, %s79
      %p88 = scmp.eq.s32.totalorder %s26, 0
      %p89 = por %p87, %p88
      %p90 = scmp.ne.s32.totalorder %s78, %s79
      %p91 = scmp.eq.s32.totalorder %s27, 1
      %p92 = por %p90, %p91
      %p94 = scmp.ne.s32.totalorder %s79, %s93
      %p95 = scmp.eq.s32.totalorder %s27, 0
      %p96 = por %p94, %p95
      %s98 = sadd.s32 %s97, 1
      %p101 = scmp.eq.s32.totalorder %s21, 1
      %p102 = scmp.ne.s32.totalorder %s97, %s99
      %p103 = scmp.eq.s32.totalorder %s21, 0
      %p104 = por %p102, %p103
      %p105 = scmp.ne.s32.totalorder %s97, %s99
      %p106 = scmp.eq.s32.totalorder %s26, 1
      %p107 = por %p105, %p106
      %p108 = scmp.ne.s32.totalorder %s99, %s100
      %p109 = scmp.eq.s32.totalorder %s26, 0
      %p110 = por %p108, %p109
      %p111 = scmp.ne.s32.totalorder %s99, %s100
      %p112 = scmp.eq.s32.totalorder %s27, 1
      %p113 = por %p111, %p112
      %p115 = scmp.ne.s32.totalorder %s100, %s114
      %p116 = scmp.eq.s32.totalorder %s27, 0
      %p117 = por %p115, %p116
      %s119 = sadd.s32 %s118, 1
      %p122 = scmp.eq.s32.totalorder %s21, 1
      %p123 = scmp.ne.s32.totalorder %s118, %s120
      %p124 = scmp.eq.s32.totalorder %s21, 0
      %p125 = por %p123, %p124
      %p126 = scmp.ne.s32.totalorder %s118, %s120
      %p127 = scmp.eq.s32.totalorder %s26, 1
      %p128 = por %p126, %p127
      %p129 = scmp.ne.s32.totalorder %s120, %s121
      %p130 = scmp.eq.s32.totalorder %s26, 0
      %p131 = por %p129, %p130
      %p132 = scmp.ne.s32.totalorder %s120, %s121
      %p133 = scmp.eq.s32.totalorder %s27, 1
      %p134 = por %p132, %p133
      %p136 = scmp.ne.s32.totalorder %s121, %s135
      %p137 = scmp.eq.s32.totalorder %s27, 0
      %p138 = por %p136, %p137
      %s140 = sadd.s32 %s139, 1
      %p143 = scmp.eq.s32.totalorder %s21, 1
      %p144 = scmp.ne.s32.totalorder %s139, %s141
      %p145 = scmp.eq.s32.totalorder %s21, 0
      %p146 = por %p144, %p145
      %p147 = scmp.ne.s32.totalorder %s139, %s141
      %p148 = scmp.eq.s32.totalorder %s26, 1
      %p149 = por %p147, %p148
      %p150 = scmp.ne.s32.totalorder %s141, %s142
      %p151 = scmp.eq.s32.totalorder %s26, 0
      %p152 = por %p150, %p151
      %p153 = scmp.ne.s32.totalorder %s141, %s142
      %p154 = scmp.eq.s32.totalorder %s27, 1
      %p155 = por %p153, %p154
      %p157 = scmp.ne.s32.totalorder %s142, %s156
      %p158 = scmp.eq.s32.totalorder %s27, 0
      %p159 = por %p157, %p158
      %s161 = sadd.s32 %s160, 1
      %p164 = scmp.eq.s32.totalorder %s21, 1
      %p165 = scmp.ne.s32.totalorder %s160, %s162
      %p166 = scmp.eq.s32.totalorder %s21, 0
      %p167 = por %p165, %p166
      %p168 = scmp.ne.s32.totalorder %s160, %s162
      %p169 = scmp.eq.s32.totalorder %s26, 1
      %p170 = por %p168, %p169
      %p171 = scmp.ne.s32.totalorder %s162, %s163
      %p172 = scmp.eq.s32.totalorder %s26, 0
      %p173 = por %p171, %p172
      %p174 = scmp.ne.s32.totalorder %s162, %s163
      %p175 = scmp.eq.s32.totalorder %s27, 1
      %p176 = por %p174, %p175
      %p178 = scmp.ne.s32.totalorder %s163, %s177
      %p179 = scmp.eq.s32.totalorder %s27, 0
      %p180 = por %p178, %p179
      %s182 = sadd.s32 %s181, 1
      %p185 = scmp.eq.s32.totalorder %s21, 1
      %p186 = scmp.ne.s32.totalorder %s181, %s183
      %p187 = scmp.eq.s32.totalorder %s21, 0
      %p188 = por %p186, %p187
      %p189 = scmp.ne.s32.totalorder %s181, %s183
      %p190 = scmp.eq.s32.totalorder %s26, 1
      %p191 = por %p189, %p190
      %p192 = scmp.ne.s32.totalorder %s183, %s184
      %p193 = scmp.eq.s32.totalorder %s26, 0
      %p194 = por %p192, %p193
      %p195 = scmp.ne.s32.totalorder %s183, %s184
      %p196 = scmp.eq.s32.totalorder %s27, 1
      %p197 = por %p195, %p196
      %p199 = scmp.ne.s32.totalorder %s184, %s198
      %p200 = scmp.eq.s32.totalorder %s27, 0
      %p201 = por %p199, %p200
      %s203 = sadd.s32 %s202, 1
      %p206 = scmp.eq.s32.totalorder %s21, 1
      %p207 = scmp.ne.s32.totalorder %s202, %s204
      %p208 = scmp.eq.s32.totalorder %s21, 0
      %p209 = por %p207, %p208
      %p210 = scmp.ne.s32.totalorder %s202, %s204
      %p211 = scmp.eq.s32.totalorder %s26, 1
      %p212 = por %p210, %p211
      %p213 = scmp.ne.s32.totalorder %s204, %s205
      %p214 = scmp.eq.s32.totalorder %s26, 0
      %p215 = por %p213, %p214
      %p216 = scmp.ne.s32.totalorder %s204, %s205
      %p217 = scmp.eq.s32.totalorder %s27, 1
      %p218 = por %p216, %p217
      %p220 = scmp.ne.s32.totalorder %s205, %s219
      %p221 = scmp.eq.s32.totalorder %s27, 0
      %p222 = por %p220, %p221
      %s224 = sadd.s32 %s223, 1
      %p227 = scmp.eq.s32.totalorder %s21, 1
      %p228 = scmp.ne.s32.totalorder %s223, %s225
      %p229 = scmp.eq.s32.totalorder %s21, 0
      %p230 = por %p228, %p229
      %p231 = scmp.ne.s32.totalorder %s223, %s225
      %p232 = scmp.eq.s32.totalorder %s26, 1
      %p233 = por %p231, %p232
      %p234 = scmp.ne.s32.totalorder %s225, %s226
      %p235 = scmp.eq.s32.totalorder %s26, 0
      %p236 = por %p234, %p235
      %p237 = scmp.ne.s32.totalorder %s225, %s226
      %p238 = scmp.eq.s32.totalorder %s27, 1
      %p239 = por %p237, %p238
      %p241 = scmp.ne.s32.totalorder %s226, %s240
      %p242 = scmp.eq.s32.totalorder %s27, 0
      %p243 = por %p241, %p242
      %s245 = sadd.s32 %s244, 1
      %p248 = scmp.eq.s32.totalorder %s21, 1
      %p249 = scmp.ne.s32.totalorder %s244, %s246
      %p250 = scmp.eq.s32.totalorder %s21, 0
      %p251 = por %p249, %p250
      %p252 = scmp.ne.s32.totalorder %s244, %s246
      %p253 = scmp.eq.s32.totalorder %s26, 1
      %p254 = por %p252, %p253
      %p255 = scmp.ne.s32.totalorder %s246, %s247
      %p256 = scmp.eq.s32.totalorder %s26, 0
      %p257 = por %p255, %p256
      %p258 = scmp.ne.s32.totalorder %s246, %s247
      %p259 = scmp.eq.s32.totalorder %s27, 1
      %p260 = por %p258, %p259
      %p262 = scmp.ne.s32.totalorder %s247, %s261
      %p263 = scmp.eq.s32.totalorder %s27, 0
      %p264 = por %p262, %p263
      %s266 = sadd.s32 %s265, 1
      %p269 = scmp.eq.s32.totalorder %s21, 1
      %p270 = scmp.ne.s32.totalorder %s265, %s267
      %p271 = scmp.eq.s32.totalorder %s21, 0
      %p272 = por %p270, %p271
      %p273 = scmp.ne.s32.totalorder %s265, %s267
      %p274 = scmp.eq.s32.totalorder %s26, 1
      %p275 = por %p273, %p274
      %p276 = scmp.ne.s32.totalorder %s267, %s268
      %p277 = scmp.eq.s32.totalorder %s26, 0
      %p278 = por %p276, %p277
      %p279 = scmp.ne.s32.totalorder %s267, %s268
      %p280 = scmp.eq.s32.totalorder %s27, 1
      %p281 = por %p279, %p280
      %p283 = scmp.ne.s32.totalorder %s268, %s282
      %p284 = scmp.eq.s32.totalorder %s27, 0
      %p285 = por %p283, %p284
      %s287 = sadd.s32 %s286, 1
      %p290 = scmp.eq.s32.totalorder %s21, 1
      %p291 = scmp.ne.s32.totalorder %s286, %s288
      %p292 = scmp.eq.s32.totalorder %s21, 0
      %p293 = por %p291, %p292
      %p294 = scmp.ne.s32.totalorder %s286, %s288
      %p295 = scmp.eq.s32.totalorder %s26, 1
      %p296 = por %p294, %p295
      %p297 = scmp.ne.s32.totalorder %s288, %s289
      %p298 = scmp.eq.s32.totalorder %s26, 0
      %p299 = por %p297, %p298
      %p300 = scmp.ne.s32.totalorder %s288, %s289
      %p301 = scmp.eq.s32.totalorder %s27, 1
      %p302 = por %p300, %p301
      %p304 = scmp.ne.s32.totalorder %s289, %s303
      %p305 = scmp.eq.s32.totalorder %s27, 0
      %p306 = por %p304, %p305
      %s308 = sadd.s32 %s307, 1
      %p311 = scmp.eq.s32.totalorder %s21, 1
      %p312 = scmp.ne.s32.totalorder %s307, %s309
      %p313 = scmp.eq.s32.totalorder %s21, 0
      %p314 = por %p312, %p313
      %p315 = scmp.ne.s32.totalorder %s307, %s309
      %p316 = scmp.eq.s32.totalorder %s26, 1
      %p317 = por %p315, %p316
      %p318 = scmp.ne.s32.totalorder %s309, %s310
      %p319 = scmp.eq.s32.totalorder %s26, 0
      %p320 = por %p318, %p319
      %p321 = scmp.ne.s32.totalorder %s309, %s310
      %p322 = scmp.eq.s32.totalorder %s27, 1
      %p323 = por %p321, %p322
      %p325 = scmp.ne.s32.totalorder %s310, %s324
      %p326 = scmp.eq.s32.totalorder %s27, 0
      %p327 = por %p325, %p326
      %s328 = ssub.s32 %s21, %s28
      %p329 = scmp.eq.s32.totalorder %s328, 0
      %s331 = sadd.s32 %s330, 1
      %s332 = scalar_select %p329, %s330, %s331
      %p335 = pneg %p329
      %p336 = scmp.eq.s32.totalorder %s21, 1
      %p337 = por %p335, %p336
      %p338 = scmp.ne.s32.totalorder %s330, %s333
      %p339 = scmp.eq.s32.totalorder %s21, 0
      %p340 = por %p338, %p339
      %p341 = scmp.ne.s32.totalorder %s330, %s333
      %p342 = scmp.eq.s32.totalorder %s26, 1
      %p343 = por %p341, %p342
      %p344 = scmp.ne.s32.totalorder %s333, %s334
      %p345 = scmp.eq.s32.totalorder %s26, 0
      %p346 = por %p344, %p345
      %p347 = scmp.ne.s32.totalorder %s333, %s334
      %p348 = scmp.eq.s32.totalorder %s27, 1
      %p349 = por %p347, %p348
      %p351 = scmp.ne.s32.totalorder %s334, %s350
      %p352 = scmp.eq.s32.totalorder %s27, 0
      %p353 = por %p351, %p352
      %p354 = scmp.le.s32.totalorder 1, %s21
      %p355 = scmp.lt.s32.totalorder %s21, 3
      %p356 = pnand %p354, %p355
      %p357 = pneg %p356
      // Predicated region
      $region9: #{bottleneck_forward.1} parent=5 // pred_check
        _
      $region10: #{bottleneck_forward.1} parent=5 // pred_check_branch
        %359 = sbr.rel (%p356) target = $region12
      $region11: #{bottleneck_forward.1} parent=5 // pred_region
        %s360 = ssub.s32 %s21, 1
        // Predicated region
        $region13: #{bottleneck_forward.1} parent=11 // pred_check
          %p361 = pneg %p68
        $region14: #{bottleneck_forward.1} parent=11 // pred_check_branch
          %363 = sbr.rel (%p361) target = $region16
        $region15: #{bottleneck_forward.1} parent=11 // pred_region
          _
        $region16: #{bottleneck_forward.1} parent=11 // pred_fallthru
          _
        // Predicated region
        $region17: #{bottleneck_forward.1} parent=11 // pred_check
          %p364 = pneg %p89
        $region18: #{bottleneck_forward.1} parent=11 // pred_check_branch
          %366 = sbr.rel (%p364) target = $region20
        $region19: #{bottleneck_forward.1} parent=11 // pred_region
          _
        $region20: #{bottleneck_forward.1} parent=11 // pred_fallthru
          _
        // Predicated region
        $region21: #{bottleneck_forward.1} parent=11 // pred_check
          %p367 = pneg %p110
        $region22: #{bottleneck_forward.1} parent=11 // pred_check_branch
          %369 = sbr.rel (%p367) target = $region24
        $region23: #{bottleneck_forward.1} parent=11 // pred_region
          _
        $region24: #{bottleneck_forward.1} parent=11 // pred_fallthru
          _
        // Predicated region
        $region25: #{bottleneck_forward.1} parent=11 // pred_check
          %p370 = pneg %p131
        $region26: #{bottleneck_forward.1} parent=11 // pred_check_branch
          %372 = sbr.rel (%p370) target = $region28
        $region27: #{bottleneck_forward.1} parent=11 // pred_region
          %s374 = ssub.s32 9216, 9216
          %375 = vsyncadd [#allocation3], %s374
          %s376 = sshll.u32 [#allocation2], 4
          %s377 = int_to_ptr.vmem [resolvable:$true] %s376
          %382 = dma.hbm_to_vmem [thread:$0]  %s4, 9216, %s377, [#allocation3], 64, 64, 4
        $region28: #{bottleneck_forward.1} parent=11 // pred_fallthru
          _
        // Predicated region
        $region29: #{bottleneck_forward.1} parent=11 // pred_check
          %p383 = pneg %p152
        $region30: #{bottleneck_forward.1} parent=11 // pred_check_branch
          %385 = sbr.rel (%p383) target = $region32
        $region31: #{bottleneck_forward.1} parent=11 // pred_region
          _
        $region32: #{bottleneck_forward.1} parent=11 // pred_fallthru
          _
        // Predicated region
        $region33: #{bottleneck_forward.1} parent=11 // pred_check
          %p386 = pneg %p173
        $region34: #{bottleneck_forward.1} parent=11 // pred_check_branch
          %388 = sbr.rel (%p386) target = $region36
        $region35: #{bottleneck_forward.1} parent=11 // pred_region
          _
        $region36: #{bottleneck_forward.1} parent=11 // pred_fallthru
          _
        // Predicated region
        $region37: #{bottleneck_forward.1} parent=11 // pred_check
          %p389 = pneg %p194
        $region38: #{bottleneck_forward.1} parent=11 // pred_check_branch
          %391 = sbr.rel (%p389) target = $region40
        $region39: #{bottleneck_forward.1} parent=11 // pred_region
          _
        $region40: #{bottleneck_forward.1} parent=11 // pred_fallthru
          _
        // Predicated region
        $region41: #{bottleneck_forward.1} parent=11 // pred_check
          %p392 = pneg %p215
        $region42: #{bottleneck_forward.1} parent=11 // pred_check_branch
          %394 = sbr.rel (%p392) target = $region44
        $region43: #{bottleneck_forward.1} parent=11 // pred_region
          _
        $region44: #{bottleneck_forward.1} parent=11 // pred_fallthru
          _
        // Predicated region
        $region45: #{bottleneck_forward.1} parent=11 // pred_check
          %p395 = pneg %p236
        $region46: #{bottleneck_forward.1} parent=11 // pred_check_branch
          %397 = sbr.rel (%p395) target = $region48
        $region47: #{bottleneck_forward.1} parent=11 // pred_region
          _
        $region48: #{bottleneck_forward.1} parent=11 // pred_fallthru
          _
        // Predicated region
        $region49: #{bottleneck_forward.1} parent=11 // pred_check
          %p398 = pneg %p257
        $region50: #{bottleneck_forward.1} parent=11 // pred_check_branch
          %400 = sbr.rel (%p398) target = $region52
        $region51: #{bottleneck_forward.1} parent=11 // pred_region
          _
        $region52: #{bottleneck_forward.1} parent=11 // pred_fallthru
          _
        // Predicated region
        $region53: #{bottleneck_forward.1} parent=11 // pred_check
          %p401 = pneg %p278
        $region54: #{bottleneck_forward.1} parent=11 // pred_check_branch
          %403 = sbr.rel (%p401) target = $region56
        $region55: #{bottleneck_forward.1} parent=11 // pred_region
          _
        $region56: #{bottleneck_forward.1} parent=11 // pred_fallthru
          _
        // Predicated region
        $region57: #{bottleneck_forward.1} parent=11 // pred_check
          %p404 = pneg %p299
        $region58: #{bottleneck_forward.1} parent=11 // pred_check_branch
          %406 = sbr.rel (%p404) target = $region60
        $region59: #{bottleneck_forward.1} parent=11 // pred_region
          _
        $region60: #{bottleneck_forward.1} parent=11 // pred_fallthru
          _
        // Predicated region
        $region61: #{bottleneck_forward.1} parent=11 // pred_check
          %p407 = pneg %p320
        $region62: #{bottleneck_forward.1} parent=11 // pred_check_branch
          %409 = sbr.rel (%p407) target = $region64
        $region63: #{bottleneck_forward.1} parent=11 // pred_region
          _
        $region64: #{bottleneck_forward.1} parent=11 // pred_fallthru
          _
      $region12: #{bottleneck_forward.1} parent=5 // pred_fallthru
        _
      %p410 = scmp.lt.s32.totalorder %s21, 2
      // Predicated region
      $region65: #{bottleneck_forward.1} parent=5 // pred_check
        %p411 = pneg %p410
      $region66: #{bottleneck_forward.1} parent=5 // pred_check_branch
        %413 = sbr.rel (%p411) target = $region68
      $region67: #{bottleneck_forward.1} parent=5 // pred_region
        // Predicated region
        $region69: #{bottleneck_forward.1} parent=67 // pred_check
          %p414 = pneg %p41
        $region70: #{bottleneck_forward.1} parent=67 // pred_check_branch
          %416 = sbr.rel (%p414) target = $region72
        $region71: #{bottleneck_forward.1} parent=67 // pred_region
          %p417 = scmp.lt.s32.totalorder %s21, 1
          %s418 = scalar_select %p417, %s21, 1
          %s419 = smul.addr %s418, 8
          %s420 = smul.addr %s419, 4
          %s421 = scalar_lea.vmem %s0, %s420
        $region72: #{bottleneck_forward.1} parent=67 // pred_fallthru
          _
      $region68: #{bottleneck_forward.1} parent=5 // pred_fallthru
        _
      %p422 = scmp.le.s32.totalorder 1, %s21
      %p423 = scmp.lt.s32.totalorder %s21, 3
      %p424 = pnand %p422, %p423
      %p425 = pneg %p424
      // Predicated region
      $region73: #{bottleneck_forward.1} parent=5 // pred_check
        _
      $region74: #{bottleneck_forward.1} parent=5 // pred_check_branch
        %427 = sbr.rel (%p424) target = $region76
      $region75: #{bottleneck_forward.1} parent=5 // pred_region
        %s428 = ssub.s32 %s21, 1
        // Predicated region
        $region77: #{bottleneck_forward.1} parent=75 // pred_check
          %p429 = pneg %p131
        $region78: #{bottleneck_forward.1} parent=75 // pred_check_branch
          %431 = sbr.rel (%p429) target = $region80
        $region79: #{bottleneck_forward.1} parent=75 // pred_region
          %432 = dma.done [#allocation3], 9216
        $region80: #{bottleneck_forward.1} parent=75 // pred_fallthru
          _
        %p433 = scmp.lt.s32.totalorder %s26, 1
        %s434 = scalar_select %p433, %s26, 1
        %s435 = smul.addr %s434, 8
        %s436 = smul.addr %s435, 4
        %s437 = scalar_lea.vmem %s0, %s436
        %p438 = pneg %p47
        %p439 = pneg %p44
        %p440 = pneg %p68
        %p441 = pneg %p65
        %p442 = pneg %p89
        %p443 = pneg %p86
        %p444 = pneg %p110
        %p445 = pneg %p107
        %p446 = pneg %p131
        %p447 = pneg %p128
        %p448 = pneg %p152
        %p449 = pneg %p149
        %p450 = pneg %p173
        %p451 = pneg %p170
        %p452 = pneg %p194
        %p453 = pneg %p191
        %p454 = pneg %p215
        %p455 = pneg %p212
        %p456 = pneg %p236
        %p457 = pneg %p233
        %p458 = pneg %p257
        %p459 = pneg %p254
        %p460 = pneg %p278
        %p461 = pneg %p275
        %p462 = pneg %p299
        %p463 = pneg %p296
        %p464 = pneg %p320
        %p465 = pneg %p317
        %p466 = pneg %p346
        %p467 = pneg %p343
        %p468 = scmp.lt.s32.totalorder %s26, 1
        %s469 = scalar_select %p468, %s26, 1
        %s470 = smul.addr %s469, 8
        %s471 = smul.addr %s470, 4
        %s472 = scalar_lea.vmem %s14, %s471
        %p473 = scmp.lt.s32.totalorder %s26, 1
        %s474 = scalar_select %p473, %s26, 1
        %s475 = smul.addr %s474, 8
        %s476 = smul.addr %s475, 4
        %s477 = scalar_lea.vmem %s0, %s476
        %p478 = scmp.lt.s32.totalorder %s26, 1
        %s479 = scalar_select %p478, %s26, 1
        %s480 = smul.addr %s479, 8
        %s481 = smul.addr %s480, 4
        %s482 = scalar_lea.vmem %s14, %s481
        %v486 = vld [vmem:[%s477] sm:$0xf]
        %v487 = vld [vmem:[%s477 + $0x4] sm:$0xf]
        %v488 = vld [vmem:[%s477 + $0x8] sm:$0xf]
        %v489 = vld [vmem:[%s477 + $0xc] sm:$0xf]
        %v490 = vld [vmem:[%s477 + $0x10] sm:$0xf]
        %v491 = vld [vmem:[%s477 + $0x14] sm:$0xf]
        %v492 = vld [vmem:[%s477 + $0x18] sm:$0xf]
        %v493 = vld [vmem:[%s477 + $0x1c] sm:$0xf]
        %v494 = vld [vmem:[%s1] sm:$0xf]
        %v495 = vld [vmem:[%s1 + $0x4] sm:$0xf]
        %v496 = vld [vmem:[%s1 + $0x8] sm:$0xf]
        %v497 = vld [vmem:[%s1 + $0xc] sm:$0xf]
        %v498 = vld [vmem:[%s1 + $0x10] sm:$0xf]
        %v499 = vld [vmem:[%s1 + $0x14] sm:$0xf]
        %v500 = vld [vmem:[%s1 + $0x18] sm:$0xf]
        %v501 = vld [vmem:[%s1 + $0x1c] sm:$0xf]
        %v502 = vld [vmem:[%s1 + $0x20] sm:$0xf]
        %v503 = vld [vmem:[%s1 + $0x24] sm:$0xf]
        %v504 = vld [vmem:[%s1 + $0x28] sm:$0xf]
        %v505 = vld [vmem:[%s1 + $0x2c] sm:$0xf]
        %v506 = vld [vmem:[%s1 + $0x30] sm:$0xf]
        %v507 = vld [vmem:[%s1 + $0x34] sm:$0xf]
        %v508 = vld [vmem:[%s1 + $0x38] sm:$0xf]
        %v509 = vld [vmem:[%s1 + $0x3c] sm:$0xf]
        %v518 = vunpack.c.l.b16 %v486
        %v519 = vunpack.c.l.b16 %v487
        %v520 = vunpack.c.l.b16 %v488
        %v521 = vunpack.c.l.b16 %v489
        %v522 = vunpack.c.l.b16 %v490
        %v523 = vunpack.c.l.b16 %v491
        %v524 = vunpack.c.l.b16 %v492
        %v525 = vunpack.c.l.b16 %v493
        %v526 = vpack.c.b16 %v519, %v518
        %v527 = vpack.c.b16 %v521, %v520
        %v528 = vpack.c.b16 %v523, %v522
        %v529 = vpack.c.b16 %v525, %v524
        %v550 = vunpack.c.l.b16 %v494
        %v551 = vunpack.c.l.b16 %v495
        %v552 = vunpack.c.l.b16 %v496
        %v553 = vunpack.c.l.b16 %v497
        %v554 = vunpack.c.l.b16 %v498
        %v555 = vunpack.c.l.b16 %v499
        %v556 = vunpack.c.l.b16 %v500
        %v557 = vunpack.c.l.b16 %v501
        %v558 = vunpack.c.l.b16 %v502
        %v559 = vunpack.c.l.b16 %v503
        %v560 = vunpack.c.l.b16 %v504
        %v561 = vunpack.c.l.b16 %v505
        %v562 = vunpack.c.l.b16 %v506
        %v563 = vunpack.c.l.b16 %v507
        %v564 = vunpack.c.l.b16 %v508
        %v565 = vunpack.c.l.b16 %v509
        %v566 = vpack.c.b16 %v551, %v550
        %v567 = vpack.c.b16 %v553, %v552
        %v568 = vpack.c.b16 %v555, %v554
        %v569 = vpack.c.b16 %v557, %v556
        %v570 = vpack.c.b16 %v559, %v558
        %v571 = vpack.c.b16 %v561, %v560
        %v572 = vpack.c.b16 %v563, %v562
        %v573 = vpack.c.b16 %v565, %v564
        %582 = vmatprep.subr.bf16.mxu0 0
        %583 = vmatpush1.bf16.msra.mxu0 %v566
        %584 = vmatprep.subr.bf16.mxu0 0
        %585 = vmatpush1.bf16.msra.mxu0 %v567
        %586 = vmatprep.subr.bf16.mxu0 0
        %587 = vmatpush1.bf16.msra.mxu0 %v568
        %588 = vmatprep.subr.bf16.mxu0 0
        %589 = vmatpush1.bf16.msra.mxu0 %v569
        %590 = vmatprep.subr.bf16.mxu0 0
        %591 = vmatpush1.bf16.msra.mxu0 %v570
        %592 = vmatprep.subr.bf16.mxu0 0
        %593 = vmatpush1.bf16.msra.mxu0 %v571
        %594 = vmatprep.subr.bf16.mxu0 0
        %595 = vmatpush1.bf16.msra.mxu0 %v572
        %596 = vmatprep.subr.bf16.mxu0 0
        %597 = vmatpush1.bf16.msra.mxu0 %v573
        %598 = vmatprep.subr.bf16.mxu0 0
        %599 = vmatpush1.bf16.msra.mxu0 0
        %600 = vmatprep.subr.bf16.mxu0 0
        %601 = vmatpush1.bf16.msra.mxu0 0
        %602 = vmatprep.subr.bf16.mxu0 0
        %603 = vmatpush1.bf16.msra.mxu0 0
        %604 = vmatprep.subr.bf16.mxu0 0
        %605 = vmatpush1.bf16.msra.mxu0 0
        %606 = vmatprep.subr.bf16.mxu0 0
        %607 = vmatpush1.bf16.msra.mxu0 0
        %608 = vmatprep.subr.bf16.mxu0 0
        %609 = vmatpush1.bf16.msra.mxu0 0
        %610 = vmatprep.subr.bf16.mxu0 0
        %611 = vmatpush1.bf16.msra.mxu0 0
        %612 = vmatprep.subr.bf16.mxu0 0
        %613 = vmatpush1.bf16.msra.mxu0 0
        %614 = vmatprep.mubr.bf16.mxu0 0
        %615 = vmatmul.mubr.bf16.gmra.mrb[0].mxu0 %v526
        %v616 = vpop.f32.mrb[0].mxu0
        %v617 = vadd.f32 0.0, %v616
        %v618 = vpop.f32.mrb[0].mxu0
        %v619 = vpop.f32.mrb[0].mxu0
        %v620 = vadd.f32 0.0, %v619
        %v621 = vpop.f32.mrb[0].mxu0
        %622 = vmatprep.mubr.bf16.mxu0 0
        %623 = vmatmul.mubr.bf16.gmra.mrb[0].mxu0 %v527
        %v624 = vpop.f32.mrb[0].mxu0
        %v625 = vadd.f32 0.0, %v624
        %v626 = vpop.f32.mrb[0].mxu0
        %v627 = vpop.f32.mrb[0].mxu0
        %v628 = vadd.f32 0.0, %v627
        %v629 = vpop.f32.mrb[0].mxu0
        %630 = vmatprep.mubr.bf16.mxu0 0
        %631 = vmatmul.mubr.bf16.gmra.mrb[0].mxu0 %v528
        %v632 = vpop.f32.mrb[0].mxu0
        %v633 = vadd.f32 0.0, %v632
        %v634 = vpop.f32.mrb[0].mxu0
        %v635 = vpop.f32.mrb[0].mxu0
        %v636 = vadd.f32 0.0, %v635
        %v637 = vpop.f32.mrb[0].mxu0
        %638 = vmatprep.mubr.bf16.mxu0 0
        %639 = vmatmul.mubr.bf16.gmra.mrb[0].mxu0 %v529
        %v640 = vpop.f32.mrb[0].mxu0
        %v641 = vadd.f32 0.0, %v640
        %v642 = vpop.f32.mrb[0].mxu0
        %v643 = vpop.f32.mrb[0].mxu0
        %v644 = vadd.f32 0.0, %v643
        %v645 = vpop.f32.mrb[0].mxu0
        %646 = vdwg.mxu0
        %v647 = vld [vmem:[%s2] sm:$0x1]
        %v649 = vlaneseq
        %v650 = vshrl.u32 %v649, 7
        %v651 = vsub.s32 0, %v650
        %v652 = vrot.slane %v647, %v651
        %v654 = vmul.f32 %v617, %v652
        %v655 = vmul.f32 %v620, %v652
        %v656 = vmul.f32 %v625, %v652
        %v657 = vmul.f32 %v628, %v652
        %v658 = vmul.f32 %v633, %v652
        %v659 = vmul.f32 %v636, %v652
        %v660 = vmul.f32 %v641, %v652
        %v661 = vmul.f32 %v644, %v652
        %v662 = vld [vmem:[%s3] sm:$0x1]
        %v664 = vlaneseq
        %v665 = vshrl.u32 %v664, 7
        %v666 = vsub.s32 0, %v665
        %v667 = vrot.slane %v662, %v666
        %v669 = vadd.f32 %v654, %v667
        %v670 = vadd.f32 %v655, %v667
        %v671 = vadd.f32 %v656, %v667
        %v672 = vadd.f32 %v657, %v667
        %v673 = vadd.f32 %v658, %v667
        %v674 = vadd.f32 %v659, %v667
        %v675 = vadd.f32 %v660, %v667
        %v676 = vadd.f32 %v661, %v667
        %v677 = vmax.f32 %v669, 0.0
        %v678 = vmax.f32 %v670, 0.0
        %v679 = vmax.f32 %v671, 0.0
        %v680 = vmax.f32 %v672, 0.0
        %v681 = vmax.f32 %v673, 0.0
        %v682 = vmax.f32 %v674, 0.0
        %v683 = vmax.f32 %v675, 0.0
        %v684 = vmax.f32 %v676, 0.0
        %v685 = vpack.c.bf16 %v678, %v677
        %v686 = vpack.c.bf16 %v680, %v679
        %v687 = vpack.c.bf16 %v682, %v681
        %v688 = vpack.c.bf16 %v684, %v683
        %v689 = vlaneseq
        %v690 = vshrl.u32 %v689, 7
        %v691 = vadd.s32 %v690, 8
        %v692 = vadd.s32 %v690, 16
        %v693 = vadd.s32 %v690, 24
        %v694 = vadd.s32 %v690, 32
        %v695 = vadd.s32 %v690, 40
        %v696 = vadd.s32 %v690, 48
        %v697 = vadd.s32 %v690, 56
        %vm698 = vcmp.lt.s32.totalorder %v690, 0
        %v699 = vsub.s32 0, %v690
        %v700 = vsel %vm698, %v699, %v690
        %v701 = vshrl.u32 %v700, 3
        %v702 = vand.u32 %v700, 7
        %v703 = vsub.s32 0, %v702
        %v704 = vsel %vm698, %v703, %v702
        %vm705 = vcmp.lt.s32.totalorder %v691, 0
        %v706 = vsub.s32 0, %v691
        %v707 = vsel %vm705, %v706, %v691
        %v708 = vshrl.u32 %v707, 3
        %v709 = vand.u32 %v707, 7
        %v710 = vsub.s32 0, %v709
        %v711 = vsel %vm705, %v710, %v709
        %vm712 = vcmp.lt.s32.totalorder %v692, 0
        %v713 = vsub.s32 0, %v692
        %v714 = vsel %vm712, %v713, %v692
        %v715 = vshrl.u32 %v714, 3
        %v716 = vand.u32 %v714, 7
        %v717 = vsub.s32 0, %v716
        %v718 = vsel %vm712, %v717, %v716
        %vm719 = vcmp.lt.s32.totalorder %v693, 0
        %v720 = vsub.s32 0, %v693
        %v721 = vsel %vm719, %v720, %v693
        %v722 = vshrl.u32 %v721, 3
        %v723 = vand.u32 %v721, 7
        %v724 = vsub.s32 0, %v723
        %v725 = vsel %vm719, %v724, %v723
        %vm726 = vcmp.lt.s32.totalorder %v694, 0
        %v727 = vsub.s32 0, %v694
        %v728 = vsel %vm726, %v727, %v694
        %v729 = vshrl.u32 %v728, 3
        %v730 = vand.u32 %v728, 7
        %v731 = vsub.s32 0, %v730
        %v732 = vsel %vm726, %v731, %v730
        %vm733 = vcmp.lt.s32.totalorder %v695, 0
        %v734 = vsub.s32 0, %v695
        %v735 = vsel %vm733, %v734, %v695
        %v736 = vshrl.u32 %v735, 3
        %v737 = vand.u32 %v735, 7
        %v738 = vsub.s32 0, %v737
        %v739 = vsel %vm733, %v738, %v737
        %vm740 = vcmp.lt.s32.totalorder %v696, 0
        %v741 = vsub.s32 0, %v696
        %v742 = vsel %vm740, %v741, %v696
        %v743 = vshrl.u32 %v742, 3
        %v744 = vand.u32 %v742, 7
        %v745 = vsub.s32 0, %v744
        %v746 = vsel %vm740, %v745, %v744
        %vm747 = vcmp.lt.s32.totalorder %v697, 0
        %v748 = vsub.s32 0, %v697
        %v749 = vsel %vm747, %v748, %v697
        %v750 = vshrl.u32 %v749, 3
        %v751 = vand.u32 %v749, 7
        %v752 = vsub.s32 0, %v751
        %v753 = vsel %vm747, %v752, %v751
        %vm754 = vcmp.ne.s32.totalorder %v704, 0
        %vm755 = vcmp.ne.s32.totalorder %v711, 0
        %vm756 = vcmp.ne.s32.totalorder %v718, 0
        %vm757 = vcmp.ne.s32.totalorder %v725, 0
        %vm758 = vcmp.ne.s32.totalorder %v732, 0
        %vm759 = vcmp.ne.s32.totalorder %v739, 0
        %vm760 = vcmp.ne.s32.totalorder %v746, 0
        %vm761 = vcmp.ne.s32.totalorder %v753, 0
        %vm762 = vcmp.lt.s32.totalorder %v704, 0
        %vm763 = vcmp.lt.s32.totalorder %v711, 0
        %vm764 = vcmp.lt.s32.totalorder %v718, 0
        %vm765 = vcmp.lt.s32.totalorder %v725, 0
        %vm766 = vcmp.lt.s32.totalorder %v732, 0
        %vm767 = vcmp.lt.s32.totalorder %v739, 0
        %vm768 = vcmp.lt.s32.totalorder %v746, 0
        %vm769 = vcmp.lt.s32.totalorder %v753, 0
        %vm770 = vmand %vm762, %vm754
        %vm771 = vmand %vm763, %vm755
        %vm772 = vmand %vm764, %vm756
        %vm773 = vmand %vm765, %vm757
        %vm774 = vmand %vm766, %vm758
        %vm775 = vmand %vm767, %vm759
        %vm776 = vmand %vm768, %vm760
        %vm777 = vmand %vm769, %vm761
        %v778 = vadd.s32 %v704, 8
        %v779 = vadd.s32 %v711, 8
        %v780 = vadd.s32 %v718, 8
        %v781 = vadd.s32 %v725, 8
        %v782 = vadd.s32 %v732, 8
        %v783 = vadd.s32 %v739, 8
        %v784 = vadd.s32 %v746, 8
        %v785 = vadd.s32 %v753, 8
        %v786 = vsel %vm770, %v778, %v704
        %v787 = vsel %vm771, %v779, %v711
        %v788 = vsel %vm772, %v780, %v718
        %v789 = vsel %vm773, %v781, %v725
        %v790 = vsel %vm774, %v782, %v732
        %v791 = vsel %vm775, %v783, %v739
        %v792 = vsel %vm776, %v784, %v746
        %v793 = vsel %vm777, %v785, %v753
        %vm794 = vcmp.eq.s32.totalorder %v786, 0
        %vm795 = vcmp.eq.s32.totalorder %v787, 0
        %vm796 = vcmp.eq.s32.totalorder %v788, 0
        %vm797 = vcmp.eq.s32.totalorder %v789, 0
        %vm798 = vcmp.eq.s32.totalorder %v790, 0
        %vm799 = vcmp.eq.s32.totalorder %v791, 0
        %vm800 = vcmp.eq.s32.totalorder %v792, 0
        %vm801 = vcmp.eq.s32.totalorder %v793, 0
        %vm802 = vsmask.f32 256
        %v804 = vshrl.u32 %v685, 16
        %v806 = vrot.slane %v804, 7
        %v807 = vshll.u32 %v685, 16
        %v809 = vor.u32 %v806, %v807
        %v811 = vshrl.u32 %v686, 16
        %v813 = vrot.slane %v811, 7
        %v814 = vshll.u32 %v686, 16
        %v816 = vor.u32 %v813, %v814
        %v817 = vsel %vm802, %v806, %v816
        %v819 = vshrl.u32 %v687, 16
        %v821 = vrot.slane %v819, 7
        %v822 = vshll.u32 %v687, 16
        %v824 = vor.u32 %v821, %v822
        %v825 = vsel %vm802, %v813, %v824
        %v827 = vshrl.u32 %v688, 16
        %v829 = vrot.slane %v827, 7
        %v830 = vshll.u32 %v688, 16
        %v832 = vor.u32 %v829, %v830
        %v833 = vsel %vm802, %v821, %v832
        %vm838 = vcmask 1040384
        %vm839 = vmand %vm838, %vm802
        %v840 = vsel %vm839, 0, %v809
        %v841 = vsel %vm794, 1, 0
        %v842 = vsel %vm795, 1, 0
        %v843 = vsel %vm796, 1, 0
        %v844 = vsel %vm797, 1, 0
        %v845 = vsel %vm798, 1, 0
        %v846 = vsel %vm799, 1, 0
        %v847 = vsel %vm800, 1, 0
        %v848 = vsel %vm801, 1, 0
        %vm849 = vcmp.eq.s32.totalorder %v841, 1
        %vm850 = vcmp.eq.s32.totalorder %v842, 1
        %vm851 = vcmp.eq.s32.totalorder %v843, 1
        %vm852 = vcmp.eq.s32.totalorder %v844, 1
        %vm853 = vcmp.eq.s32.totalorder %v845, 1
        %vm854 = vcmp.eq.s32.totalorder %v846, 1
        %vm855 = vcmp.eq.s32.totalorder %v847, 1
        %vm856 = vcmp.eq.s32.totalorder %v848, 1
        %vm857 = vmpackc.low %vm849, %vm849
        %vm858 = vmpackc.low %vm850, %vm850
        %vm859 = vmpackc.low %vm851, %vm851
        %vm860 = vmpackc.low %vm852, %vm852
        %vm861 = vmpackc.low %vm853, %vm853
        %vm862 = vmpackc.low %vm854, %vm854
        %vm863 = vmpackc.low %vm855, %vm855
        %vm864 = vmpackc.low %vm856, %vm856
        %v865 = vsel %vm857, 65537, 0
        %v866 = vsel %vm858, 65537, 0
        %v867 = vsel %vm859, 65537, 0
        %v868 = vsel %vm860, 65537, 0
        %v869 = vsel %vm861, 65537, 0
        %v870 = vsel %vm862, 65537, 0
        %v871 = vsel %vm863, 65537, 0
        %v872 = vsel %vm864, 65537, 0
        %v873 = vunpack.c.l.b16 %v865
        %v874 = vunpack.c.l.b16 %v866
        %v875 = vunpack.c.l.b16 %v867
        %v876 = vunpack.c.l.b16 %v868
        %v877 = vunpack.c.l.b16 %v869
        %v878 = vunpack.c.l.b16 %v870
        %v879 = vunpack.c.l.b16 %v871
        %v880 = vunpack.c.l.b16 %v872
        %v881 = vpack.c.b16 %v874, %v873
        %v882 = vpack.c.b16 %v876, %v875
        %v883 = vpack.c.b16 %v878, %v877
        %v884 = vpack.c.b16 %v880, %v879
        %vm885 = vcmp.ne.s16.totalorder %v881, 0
        %vm886 = vcmp.ne.s16.totalorder %v882, 0
        %vm887 = vcmp.ne.s16.totalorder %v883, 0
        %vm888 = vcmp.ne.s16.totalorder %v884, 0
        %v889 = vsel %vm885, 0, %v840
        %v890 = vsel %vm886, 0, %v817
        %v891 = vsel %vm887, 0, %v825
        %v892 = vsel %vm888, 0, %v833
        %vm893 = vcmp.eq.s32.totalorder %v786, 7
        %vm894 = vcmp.eq.s32.totalorder %v787, 7
        %vm895 = vcmp.eq.s32.totalorder %v788, 7
        %vm896 = vcmp.eq.s32.totalorder %v789, 7
        %vm897 = vcmp.eq.s32.totalorder %v790, 7
        %vm898 = vcmp.eq.s32.totalorder %v791, 7
        %vm899 = vcmp.eq.s32.totalorder %v792, 7
        %vm900 = vcmp.eq.s32.totalorder %v793, 7
        %vm901 = vsmask.f32 7424
        %v902 = vrot.slane %v807, 1
        %v903 = vor.u32 %v804, %v902
        %v904 = vrot.slane %v814, 1
        %v905 = vsel %vm901, %v903, %v904
        %v906 = vor.u32 %v811, %v904
        %v907 = vrot.slane %v822, 1
        %v908 = vsel %vm901, %v906, %v907
        %v909 = vor.u32 %v819, %v907
        %v910 = vrot.slane %v830, 1
        %v911 = vsel %vm901, %v909, %v910
        %v912 = vor.u32 %v827, %v910
        %vm917 = vcmask 1047552
        %vm918 = vmand %vm917, %vm901
        %v919 = vsel %vm918, %v912, 0
        %v920 = vsel %vm893, 1, 0
        %v921 = vsel %vm894, 1, 0
        %v922 = vsel %vm895, 1, 0
        %v923 = vsel %vm896, 1, 0
        %v924 = vsel %vm897, 1, 0
        %v925 = vsel %vm898, 1, 0
        %v926 = vsel %vm899, 1, 0
        %v927 = vsel %vm900, 1, 0
        %vm928 = vcmp.eq.s32.totalorder %v920, 1
        %vm929 = vcmp.eq.s32.totalorder %v921, 1
        %vm930 = vcmp.eq.s32.totalorder %v922, 1
        %vm931 = vcmp.eq.s32.totalorder %v923, 1
        %vm932 = vcmp.eq.s32.totalorder %v924, 1
        %vm933 = vcmp.eq.s32.totalorder %v925, 1
        %vm934 = vcmp.eq.s32.totalorder %v926, 1
        %vm935 = vcmp.eq.s32.totalorder %v927, 1
        %vm936 = vmpackc.low %vm928, %vm928
        %vm937 = vmpackc.low %vm929, %vm929
        %vm938 = vmpackc.low %vm930, %vm930
        %vm939 = vmpackc.low %vm931, %vm931
        %vm940 = vmpackc.low %vm932, %vm932
        %vm941 = vmpackc.low %vm933, %vm933
        %vm942 = vmpackc.low %vm934, %vm934
        %vm943 = vmpackc.low %vm935, %vm935
        %v944 = vsel %vm936, 65537, 0
        %v945 = vsel %vm937, 65537, 0
        %v946 = vsel %vm938, 65537, 0
        %v947 = vsel %vm939, 65537, 0
        %v948 = vsel %vm940, 65537, 0
        %v949 = vsel %vm941, 65537, 0
        %v950 = vsel %vm942, 65537, 0
        %v951 = vsel %vm943, 65537, 0
        %v952 = vunpack.c.l.b16 %v944
        %v953 = vunpack.c.l.b16 %v945
        %v954 = vunpack.c.l.b16 %v946
        %v955 = vunpack.c.l.b16 %v947
        %v956 = vunpack.c.l.b16 %v948
        %v957 = vunpack.c.l.b16 %v949
        %v958 = vunpack.c.l.b16 %v950
        %v959 = vunpack.c.l.b16 %v951
        %v960 = vpack.c.b16 %v953, %v952
        %v961 = vpack.c.b16 %v955, %v954
        %v962 = vpack.c.b16 %v957, %v956
        %v963 = vpack.c.b16 %v959, %v958
        %vm964 = vcmp.ne.s16.totalorder %v960, 0
        %vm965 = vcmp.ne.s16.totalorder %v961, 0
        %vm966 = vcmp.ne.s16.totalorder %v962, 0
        %vm967 = vcmp.ne.s16.totalorder %v963, 0
        %v968 = vsel %vm964, 0, %v905
        %v969 = vsel %vm965, 0, %v908
        %v970 = vsel %vm966, 0, %v911
        %v971 = vsel %vm967, 0, %v919
        %vm984 = vcmask 1043456
        %v985 = vrot.slane %v889, 4
        %v986 = vrot.slane %v685, 4
        %v987 = vrot.slane %v968, 4
        %v988 = vrot.slane %v890, 4
        %v989 = vsel %vm984, %v985, %v988
        %v990 = vrot.slane %v686, 4
        %v991 = vsel %vm984, %v986, %v990
        %v992 = vrot.slane %v969, 4
        %v993 = vsel %vm984, %v987, %v992
        %v994 = vrot.slane %v891, 4
        %v995 = vsel %vm984, %v988, %v994
        %v996 = vrot.slane %v687, 4
        %v997 = vsel %vm984, %v990, %v996
        %v998 = vrot.slane %v970, 4
        %v999 = vsel %vm984, %v992, %v998
        %v1000 = vrot.slane %v892, 4
        %v1001 = vsel %vm984, %v994, %v1000
        %v1002 = vrot.slane %v688, 4
        %v1003 = vsel %vm984, %v996, %v1002
        %v1004 = vrot.slane %v971, 4
        %v1005 = vsel %vm984, %v998, %v1004
        %vm1015 = vcmask 1043456
        %v1018 = vsel %vm1015, 0, %v985
        %v1021 = vsel %vm1015, 0, %v986
        %v1024 = vsel %vm1015, 0, %v987
        %v1027 = vsel %vm1015, %v1000, 0
        %v1030 = vsel %vm1015, %v1002, 0
        %v1033 = vsel %vm1015, %v1004, 0
        %v1035 = vld [vmem:[#allocation2] sm:$0xf]
        %v1036 = vld [vmem:[#allocation2 + $0x4] sm:$0xf]
        %v1037 = vld [vmem:[#allocation2 + $0x8] sm:$0xf]
        %v1038 = vld [vmem:[#allocation2 + $0xc] sm:$0xf]
        %v1039 = vld [vmem:[#allocation2 + $0x10] sm:$0xf]
        %v1040 = vld [vmem:[#allocation2 + $0x14] sm:$0xf]
        %v1041 = vld [vmem:[#allocation2 + $0x18] sm:$0xf]
        %v1042 = vld [vmem:[#allocation2 + $0x1c] sm:$0xf]
        %v1043 = vld [vmem:[#allocation2 + $0x20] sm:$0xf]
        %v1044 = vld [vmem:[#allocation2 + $0x24] sm:$0xf]
        %v1045 = vld [vmem:[#allocation2 + $0x28] sm:$0xf]
        %v1046 = vld [vmem:[#allocation2 + $0x2c] sm:$0xf]
        %v1047 = vld [vmem:[#allocation2 + $0x30] sm:$0xf]
        %v1048 = vld [vmem:[#allocation2 + $0x34] sm:$0xf]
        %v1049 = vld [vmem:[#allocation2 + $0x38] sm:$0xf]
        %v1050 = vld [vmem:[#allocation2 + $0x3c] sm:$0xf]
        %v1051 = vld [vmem:[#allocation2 + $0x40] sm:$0xf]
        %v1052 = vld [vmem:[#allocation2 + $0x44] sm:$0xf]
        %v1053 = vld [vmem:[#allocation2 + $0x48] sm:$0xf]
        %v1054 = vld [vmem:[#allocation2 + $0x4c] sm:$0xf]
        %v1055 = vld [vmem:[#allocation2 + $0x50] sm:$0xf]
        %v1056 = vld [vmem:[#allocation2 + $0x54] sm:$0xf]
        %v1057 = vld [vmem:[#allocation2 + $0x58] sm:$0xf]
        %v1058 = vld [vmem:[#allocation2 + $0x5c] sm:$0xf]
        %v1059 = vld [vmem:[#allocation2 + $0x60] sm:$0xf]
        %v1060 = vld [vmem:[#allocation2 + $0x64] sm:$0xf]
        %v1061 = vld [vmem:[#allocation2 + $0x68] sm:$0xf]
        %v1062 = vld [vmem:[#allocation2 + $0x6c] sm:$0xf]
        %v1063 = vld [vmem:[#allocation2 + $0x70] sm:$0xf]
        %v1064 = vld [vmem:[#allocation2 + $0x74] sm:$0xf]
        %v1065 = vld [vmem:[#allocation2 + $0x78] sm:$0xf]
        %v1066 = vld [vmem:[#allocation2 + $0x7c] sm:$0xf]
        %v1067 = vld [vmem:[#allocation2 + $0x80] sm:$0xf]
        %v1068 = vld [vmem:[#allocation2 + $0x84] sm:$0xf]
        %v1069 = vld [vmem:[#allocation2 + $0x88] sm:$0xf]
        %v1070 = vld [vmem:[#allocation2 + $0x8c] sm:$0xf]
        %v1071 = vld [vmem:[#allocation2 + $0x90] sm:$0xf]
        %v1072 = vld [vmem:[#allocation2 + $0x94] sm:$0xf]
        %v1073 = vld [vmem:[#allocation2 + $0x98] sm:$0xf]
        %v1074 = vld [vmem:[#allocation2 + $0x9c] sm:$0xf]
        %v1075 = vld [vmem:[#allocation2 + $0xa0] sm:$0xf]
        %v1076 = vld [vmem:[#allocation2 + $0xa4] sm:$0xf]
        %v1077 = vld [vmem:[#allocation2 + $0xa8] sm:$0xf]
        %v1078 = vld [vmem:[#allocation2 + $0xac] sm:$0xf]
        %v1079 = vld [vmem:[#allocation2 + $0xb0] sm:$0xf]
        %v1080 = vld [vmem:[#allocation2 + $0xb4] sm:$0xf]
        %v1081 = vld [vmem:[#allocation2 + $0xb8] sm:$0xf]
        %v1082 = vld [vmem:[#allocation2 + $0xbc] sm:$0xf]
        %v1083 = vld [vmem:[#allocation2 + $0xc0] sm:$0xf]
        %v1084 = vld [vmem:[#allocation2 + $0xc4] sm:$0xf]
        %v1085 = vld [vmem:[#allocation2 + $0xc8] sm:$0xf]
        %v1086 = vld [vmem:[#allocation2 + $0xcc] sm:$0xf]
        %v1087 = vld [vmem:[#allocation2 + $0xd0] sm:$0xf]
        %v1088 = vld [vmem:[#allocation2 + $0xd4] sm:$0xf]
        %v1089 = vld [vmem:[#allocation2 + $0xd8] sm:$0xf]
        %v1090 = vld [vmem:[#allocation2 + $0xdc] sm:$0xf]
        %v1091 = vld [vmem:[#allocation2 + $0xe0] sm:$0xf]
        %v1092 = vld [vmem:[#allocation2 + $0xe4] sm:$0xf]
        %v1093 = vld [vmem:[#allocation2 + $0xe8] sm:$0xf]
        %v1094 = vld [vmem:[#allocation2 + $0xec] sm:$0xf]
        %v1095 = vld [vmem:[#allocation2 + $0xf0] sm:$0xf]
        %v1096 = vld [vmem:[#allocation2 + $0xf4] sm:$0xf]
        %v1097 = vld [vmem:[#allocation2 + $0xf8] sm:$0xf]
        %v1098 = vld [vmem:[#allocation2 + $0xfc] sm:$0xf]
        %v1099 = vld [vmem:[#allocation2 + $0x100] sm:$0xf]
        %v1100 = vld [vmem:[#allocation2 + $0x104] sm:$0xf]
        %v1101 = vld [vmem:[#allocation2 + $0x108] sm:$0xf]
        %v1102 = vld [vmem:[#allocation2 + $0x10c] sm:$0xf]
        %v1103 = vld [vmem:[#allocation2 + $0x110] sm:$0xf]
        %v1104 = vld [vmem:[#allocation2 + $0x114] sm:$0xf]
        %v1105 = vld [vmem:[#allocation2 + $0x118] sm:$0xf]
        %v1106 = vld [vmem:[#allocation2 + $0x11c] sm:$0xf]
        %v1107 = vld [vmem:[#allocation2 + $0x120] sm:$0xf]
        %v1108 = vld [vmem:[#allocation2 + $0x124] sm:$0xf]
        %v1109 = vld [vmem:[#allocation2 + $0x128] sm:$0xf]
        %v1110 = vld [vmem:[#allocation2 + $0x12c] sm:$0xf]
        %v1111 = vld [vmem:[#allocation2 + $0x130] sm:$0xf]
        %v1112 = vld [vmem:[#allocation2 + $0x134] sm:$0xf]
        %v1113 = vld [vmem:[#allocation2 + $0x138] sm:$0xf]
        %v1114 = vld [vmem:[#allocation2 + $0x13c] sm:$0xf]
        %v1115 = vld [vmem:[#allocation2 + $0x140] sm:$0xf]
        %v1116 = vld [vmem:[#allocation2 + $0x144] sm:$0xf]
        %v1117 = vld [vmem:[#allocation2 + $0x148] sm:$0xf]
        %v1118 = vld [vmem:[#allocation2 + $0x14c] sm:$0xf]
        %v1119 = vld [vmem:[#allocation2 + $0x150] sm:$0xf]
        %v1120 = vld [vmem:[#allocation2 + $0x154] sm:$0xf]
        %v1121 = vld [vmem:[#allocation2 + $0x158] sm:$0xf]
        %v1122 = vld [vmem:[#allocation2 + $0x15c] sm:$0xf]
        %v1123 = vld [vmem:[#allocation2 + $0x160] sm:$0xf]
        %v1124 = vld [vmem:[#allocation2 + $0x164] sm:$0xf]
        %v1125 = vld [vmem:[#allocation2 + $0x168] sm:$0xf]
        %v1126 = vld [vmem:[#allocation2 + $0x16c] sm:$0xf]
        %v1127 = vld [vmem:[#allocation2 + $0x170] sm:$0xf]
        %v1128 = vld [vmem:[#allocation2 + $0x174] sm:$0xf]
        %v1129 = vld [vmem:[#allocation2 + $0x178] sm:$0xf]
        %v1130 = vld [vmem:[#allocation2 + $0x17c] sm:$0xf]
        %v1179 = vunpack.c.l.b16 %v1083
        %v1180 = vunpack.c.l.b16 %v1084
        %v1181 = vunpack.c.l.b16 %v1085
        %v1182 = vunpack.c.l.b16 %v1086
        %v1183 = vunpack.c.l.b16 %v1087
        %v1184 = vunpack.c.l.b16 %v1088
        %v1185 = vunpack.c.l.b16 %v1089
        %v1186 = vunpack.c.l.b16 %v1090
        %v1187 = vunpack.c.l.b16 %v1091
        %v1188 = vunpack.c.l.b16 %v1092
        %v1189 = vunpack.c.l.b16 %v1093
        %v1190 = vunpack.c.l.b16 %v1094
        %v1191 = vunpack.c.l.b16 %v1095
        %v1192 = vunpack.c.l.b16 %v1096
        %v1193 = vunpack.c.l.b16 %v1097
        %v1194 = vunpack.c.l.b16 %v1098
        %v1195 = vunpack.c.l.b16 %v1099
        %v1196 = vunpack.c.l.b16 %v1100
        %v1197 = vunpack.c.l.b16 %v1101
        %v1198 = vunpack.c.l.b16 %v1102
        %v1199 = vunpack.c.l.b16 %v1103
        %v1200 = vunpack.c.l.b16 %v1104
        %v1201 = vunpack.c.l.b16 %v1105
        %v1202 = vunpack.c.l.b16 %v1106
        %v1203 = vunpack.c.l.b16 %v1107
        %v1204 = vunpack.c.l.b16 %v1108
        %v1205 = vunpack.c.l.b16 %v1109
        %v1206 = vunpack.c.l.b16 %v1110
        %v1207 = vunpack.c.l.b16 %v1111
        %v1208 = vunpack.c.l.b16 %v1112
        %v1209 = vunpack.c.l.b16 %v1113
        %v1210 = vunpack.c.l.b16 %v1114
        %v1211 = vunpack.c.l.b16 %v1115
        %v1212 = vunpack.c.l.b16 %v1116
        %v1213 = vunpack.c.l.b16 %v1117
        %v1214 = vunpack.c.l.b16 %v1118
        %v1215 = vunpack.c.l.b16 %v1119
        %v1216 = vunpack.c.l.b16 %v1120
        %v1217 = vunpack.c.l.b16 %v1121
        %v1218 = vunpack.c.l.b16 %v1122
        %v1219 = vunpack.c.l.b16 %v1123
        %v1220 = vunpack.c.l.b16 %v1124
        %v1221 = vunpack.c.l.b16 %v1125
        %v1222 = vunpack.c.l.b16 %v1126
        %v1223 = vunpack.c.l.b16 %v1127
        %v1224 = vunpack.c.l.b16 %v1128
        %v1225 = vunpack.c.l.b16 %v1129
        %v1226 = vunpack.c.l.b16 %v1130
        %v1227 = vpack.c.b16 %v1180, %v1179
        %v1228 = vpack.c.b16 %v1182, %v1181
        %v1229 = vpack.c.b16 %v1184, %v1183
        %v1230 = vpack.c.b16 %v1186, %v1185
        %v1231 = vpack.c.b16 %v1188, %v1187
        %v1232 = vpack.c.b16 %v1190, %v1189
        %v1233 = vpack.c.b16 %v1192, %v1191
        %v1234 = vpack.c.b16 %v1194, %v1193
        %v1235 = vpack.c.b16 %v1196, %v1195
        %v1236 = vpack.c.b16 %v1198, %v1197
        %v1237 = vpack.c.b16 %v1200, %v1199
        %v1238 = vpack.c.b16 %v1202, %v1201
        %v1239 = vpack.c.b16 %v1204, %v1203
        %v1240 = vpack.c.b16 %v1206, %v1205
        %v1241 = vpack.c.b16 %v1208, %v1207
        %v1242 = vpack.c.b16 %v1210, %v1209
        %v1243 = vpack.c.b16 %v1212, %v1211
        %v1244 = vpack.c.b16 %v1214, %v1213
        %v1245 = vpack.c.b16 %v1216, %v1215
        %v1246 = vpack.c.b16 %v1218, %v1217
        %v1247 = vpack.c.b16 %v1220, %v1219
        %v1248 = vpack.c.b16 %v1222, %v1221
        %v1249 = vpack.c.b16 %v1224, %v1223
        %v1250 = vpack.c.b16 %v1226, %v1225
        %1275 = vmatprep.subr.bf16.mxu0 0
        %1276 = vmatpush1.bf16.msra.mxu0 %v1227
        %1277 = vmatprep.subr.bf16.mxu0 0
        %1278 = vmatpush1.bf16.msra.mxu0 %v1228
        %1279 = vmatprep.subr.bf16.mxu0 0
        %1280 = vmatpush1.bf16.msra.mxu0 %v1229
        %1281 = vmatprep.subr.bf16.mxu0 0
        %1282 = vmatpush1.bf16.msra.mxu0 %v1230
        %1283 = vmatprep.subr.bf16.mxu0 0
        %1284 = vmatpush1.bf16.msra.mxu0 %v1231
        %1285 = vmatprep.subr.bf16.mxu0 0
        %1286 = vmatpush1.bf16.msra.mxu0 %v1232
        %1287 = vmatprep.subr.bf16.mxu0 0
        %1288 = vmatpush1.bf16.msra.mxu0 %v1233
        %1289 = vmatprep.subr.bf16.mxu0 0
        %1290 = vmatpush1.bf16.msra.mxu0 %v1234
        %1291 = vmatprep.subr.bf16.mxu0 0
        %1292 = vmatpush1.bf16.msra.mxu0 %v1235
        %1293 = vmatprep.subr.bf16.mxu0 0
        %1294 = vmatpush1.bf16.msra.mxu0 %v1236
        %1295 = vmatprep.subr.bf16.mxu0 0
        %1296 = vmatpush1.bf16.msra.mxu0 %v1237
        %1297 = vmatprep.subr.bf16.mxu0 0
        %1298 = vmatpush1.bf16.msra.mxu0 %v1238
        %1299 = vmatprep.subr.bf16.mxu0 0
        %1300 = vmatpush1.bf16.msra.mxu0 %v1239
        %1301 = vmatprep.subr.bf16.mxu0 0
        %1302 = vmatpush1.bf16.msra.mxu0 %v1240
        %1303 = vmatprep.subr.bf16.mxu0 0
        %1304 = vmatpush1.bf16.msra.mxu0 %v1241
        %1305 = vmatprep.subr.bf16.mxu0 0
        %1306 = vmatpush1.bf16.msra.mxu0 %v1242
        %1307 = vmatprep.mubr.bf16.mxu0 %v685
        %1308 = vmatmul.mubr.bf16.gmra.mrb[0].mxu0 %v889
        %v1309 = vpop.f32.mrb[0].mxu0
        %v1310 = vadd.f32 0.0, %v1309
        %v1311 = vpop.f32.mrb[0].mxu0
        %v1312 = vpop.f32.mrb[0].mxu0
        %v1313 = vadd.f32 0.0, %v1312
        %v1314 = vpop.f32.mrb[0].mxu0
        %1315 = vmatprep.mubr.bf16.mxu0 %v686
        %1316 = vmatmul.mubr.bf16.gmra.mrb[0].mxu0 %v890
        %v1317 = vpop.f32.mrb[0].mxu0
        %v1318 = vadd.f32 0.0, %v1317
        %v1319 = vpop.f32.mrb[0].mxu0
        %v1320 = vpop.f32.mrb[0].mxu0
        %v1321 = vadd.f32 0.0, %v1320
        %v1322 = vpop.f32.mrb[0].mxu0
        %1323 = vmatprep.mubr.bf16.mxu0 %v687
        %1324 = vmatmul.mubr.bf16.gmra.mrb[0].mxu0 %v891
        %v1325 = vpop.f32.mrb[0].mxu0
        %v1326 = vadd.f32 0.0, %v1325
        %v1327 = vpop.f32.mrb[0].mxu0
        %v1328 = vpop.f32.mrb[0].mxu0
        %v1329 = vadd.f32 0.0, %v1328
        %v1330 = vpop.f32.mrb[0].mxu0
        %1331 = vmatprep.mubr.bf16.mxu0 %v688
        %1332 = vmatmul.mubr.bf16.gmra.mrb[0].mxu0 %v892
        %v1333 = vpop.f32.mrb[0].mxu0
        %v1334 = vadd.f32 0.0, %v1333
        %v1335 = vpop.f32.mrb[0].mxu0
        %v1336 = vpop.f32.mrb[0].mxu0
        %v1337 = vadd.f32 0.0, %v1336
        %v1338 = vpop.f32.mrb[0].mxu0
        %1339 = vdwg.mxu0
        %1340 = vmatprep.subr.bf16.mxu0 0
        %1341 = vmatpush1.bf16.msra.mxu0 %v1243
        %1342 = vmatprep.subr.bf16.mxu0 0
        %1343 = vmatpush1.bf16.msra.mxu0 %v1244
        %1344 = vmatprep.subr.bf16.mxu0 0
        %1345 = vmatpush1.bf16.msra.mxu0 %v1245
        %1346 = vmatprep.subr.bf16.mxu0 0
        %1347 = vmatpush1.bf16.msra.mxu0 %v1246
        %1348 = vmatprep.subr.bf16.mxu0 0
        %1349 = vmatpush1.bf16.msra.mxu0 %v1247
        %1350 = vmatprep.subr.bf16.mxu0 0
        %1351 = vmatpush1.bf16.msra.mxu0 %v1248
        %1352 = vmatprep.subr.bf16.mxu0 0
        %1353 = vmatpush1.bf16.msra.mxu0 %v1249
        %1354 = vmatprep.subr.bf16.mxu0 0
        %1355 = vmatpush1.bf16.msra.mxu0 %v1250
        %1356 = vmatprep.subr.bf16.mxu0 0
        %1357 = vmatpush1.bf16.msra.mxu0 0
        %1358 = vmatprep.subr.bf16.mxu0 0
        %1359 = vmatpush1.bf16.msra.mxu0 0
        %1360 = vmatprep.subr.bf16.mxu0 0
        %1361 = vmatpush1.bf16.msra.mxu0 0
        %1362 = vmatprep.subr.bf16.mxu0 0
        %1363 = vmatpush1.bf16.msra.mxu0 0
        %1364 = vmatprep.subr.bf16.mxu0 0
        %1365 = vmatpush1.bf16.msra.mxu0 0
        %1366 = vmatprep.subr.bf16.mxu0 0
        %1367 = vmatpush1.bf16.msra.mxu0 0
        %1368 = vmatprep.subr.bf16.mxu0 0
        %1369 = vmatpush1.bf16.msra.mxu0 0
        %1370 = vmatprep.subr.bf16.mxu0 0
        %1371 = vmatpush1.bf16.msra.mxu0 0
        %1372 = vmatprep.mubr.bf16.mxu0 0
        %1373 = vmatmul.mubr.bf16.gmra.mrb[0].mxu0 %v968
        %v1374 = vpop.f32.mrb[0].mxu0
        %v1375 = vadd.f32 %v1310, %v1374
        %v1376 = vpop.f32.mrb[0].mxu0
        %v1377 = vpop.f32.mrb[0].mxu0
        %v1378 = vadd.f32 %v1313, %v1377
        %v1379 = vpop.f32.mrb[0].mxu0
        %1380 = vmatprep.mubr.bf16.mxu0 0
        %1381 = vmatmul.mubr.bf16.gmra.mrb[0].mxu0 %v969
        %v1382 = vpop.f32.mrb[0].mxu0
        %v1383 = vadd.f32 %v1318, %v1382
        %v1384 = vpop.f32.mrb[0].mxu0
        %v1385 = vpop.f32.mrb[0].mxu0
        %v1386 = vadd.f32 %v1321, %v1385
        %v1387 = vpop.f32.mrb[0].mxu0
        %1388 = vmatprep.mubr.bf16.mxu0 0
        %1389 = vmatmul.mubr.bf16.gmra.mrb[0].mxu0 %v970
        %v1390 = vpop.f32.mrb[0].mxu0
        %v1391 = vadd.f32 %v1326, %v1390
        %v1392 = vpop.f32.mrb[0].mxu0
        %v1393 = vpop.f32.mrb[0].mxu0
        %v1394 = vadd.f32 %v1329, %v1393
        %v1395 = vpop.f32.mrb[0].mxu0
        %1396 = vmatprep.mubr.bf16.mxu0 0
        %1397 = vmatmul.mubr.bf16.gmra.mrb[0].mxu0 %v971
        %v1398 = vpop.f32.mrb[0].mxu0
        %v1399 = vadd.f32 %v1334, %v1398
        %v1400 = vpop.f32.mrb[0].mxu0
        %v1401 = vpop.f32.mrb[0].mxu0
        %v1402 = vadd.f32 %v1337, %v1401
        %v1403 = vpop.f32.mrb[0].mxu0
        %1404 = vdwg.mxu0
        %v1453 = vunpack.c.l.b16 %v1035
        %v1454 = vunpack.c.l.b16 %v1036
        %v1455 = vunpack.c.l.b16 %v1037
        %v1456 = vunpack.c.l.b16 %v1038
        %v1457 = vunpack.c.l.b16 %v1039
        %v1458 = vunpack.c.l.b16 %v1040
        %v1459 = vunpack.c.l.b16 %v1041
        %v1460 = vunpack.c.l.b16 %v1042
        %v1461 = vunpack.c.l.b16 %v1043
        %v1462 = vunpack.c.l.b16 %v1044
        %v1463 = vunpack.c.l.b16 %v1045
        %v1464 = vunpack.c.l.b16 %v1046
        %v1465 = vunpack.c.l.b16 %v1047
        %v1466 = vunpack.c.l.b16 %v1048
        %v1467 = vunpack.c.l.b16 %v1049
        %v1468 = vunpack.c.l.b16 %v1050
        %v1469 = vunpack.c.l.b16 %v1051
        %v1470 = vunpack.c.l.b16 %v1052
        %v1471 = vunpack.c.l.b16 %v1053
        %v1472 = vunpack.c.l.b16 %v1054
        %v1473 = vunpack.c.l.b16 %v1055
        %v1474 = vunpack.c.l.b16 %v1056
        %v1475 = vunpack.c.l.b16 %v1057
        %v1476 = vunpack.c.l.b16 %v1058
        %v1477 = vunpack.c.l.b16 %v1059
        %v1478 = vunpack.c.l.b16 %v1060
        %v1479 = vunpack.c.l.b16 %v1061
        %v1480 = vunpack.c.l.b16 %v1062
        %v1481 = vunpack.c.l.b16 %v1063
        %v1482 = vunpack.c.l.b16 %v1064
        %v1483 = vunpack.c.l.b16 %v1065
        %v1484 = vunpack.c.l.b16 %v1066
        %v1485 = vunpack.c.l.b16 %v1067
        %v1486 = vunpack.c.l.b16 %v1068
        %v1487 = vunpack.c.l.b16 %v1069
        %v1488 = vunpack.c.l.b16 %v1070
        %v1489 = vunpack.c.l.b16 %v1071
        %v1490 = vunpack.c.l.b16 %v1072
        %v1491 = vunpack.c.l.b16 %v1073
        %v1492 = vunpack.c.l.b16 %v1074
        %v1493 = vunpack.c.l.b16 %v1075
        %v1494 = vunpack.c.l.b16 %v1076
        %v1495 = vunpack.c.l.b16 %v1077
        %v1496 = vunpack.c.l.b16 %v1078
        %v1497 = vunpack.c.l.b16 %v1079
        %v1498 = vunpack.c.l.b16 %v1080
        %v1499 = vunpack.c.l.b16 %v1081
        %v1500 = vunpack.c.l.b16 %v1082
        %v1501 = vpack.c.b16 %v1454, %v1453
        %v1502 = vpack.c.b16 %v1456, %v1455
        %v1503 = vpack.c.b16 %v1458, %v1457
        %v1504 = vpack.c.b16 %v1460, %v1459
        %v1505 = vpack.c.b16 %v1462, %v1461
        %v1506 = vpack.c.b16 %v1464, %v1463
        %v1507 = vpack.c.b16 %v1466, %v1465
        %v1508 = vpack.c.b16 %v1468, %v1467
        %v1509 = vpack.c.b16 %v1470, %v1469
        %v1510 = vpack.c.b16 %v1472, %v1471
        %v1511 = vpack.c.b16 %v1474, %v1473
        %v1512 = vpack.c.b16 %v1476, %v1475
        %v1513 = vpack.c.b16 %v1478, %v1477
        %v1514 = vpack.c.b16 %v1480, %v1479
        %v1515 = vpack.c.b16 %v1482, %v1481
        %v1516 = vpack.c.b16 %v1484, %v1483
        %v1517 = vpack.c.b16 %v1486, %v1485
        %v1518 = vpack.c.b16 %v1488, %v1487
        %v1519 = vpack.c.b16 %v1490, %v1489
        %v1520 = vpack.c.b16 %v1492, %v1491
        %v1521 = vpack.c.b16 %v1494, %v1493
        %v1522 = vpack.c.b16 %v1496, %v1495
        %v1523 = vpack.c.b16 %v1498, %v1497
        %v1524 = vpack.c.b16 %v1500, %v1499
        %1549 = vmatprep.subr.bf16.mxu0 0
        %1550 = vmatpush1.bf16.msra.mxu0 %v1501
        %1551 = vmatprep.subr.bf16.mxu0 0
        %1552 = vmatpush1.bf16.msra.mxu0 %v1502
        %1553 = vmatprep.subr.bf16.mxu0 0
        %1554 = vmatpush1.bf16.msra.mxu0 %v1503
        %1555 = vmatprep.subr.bf16.mxu0 0
        %1556 = vmatpush1.bf16.msra.mxu0 %v1504
        %1557 = vmatprep.subr.bf16.mxu0 0
        %1558 = vmatpush1.bf16.msra.mxu0 %v1505
        %1559 = vmatprep.subr.bf16.mxu0 0
        %1560 = vmatpush1.bf16.msra.mxu0 %v1506
        %1561 = vmatprep.subr.bf16.mxu0 0
        %1562 = vmatpush1.bf16.msra.mxu0 %v1507
        %1563 = vmatprep.subr.bf16.mxu0 0
        %1564 = vmatpush1.bf16.msra.mxu0 %v1508
        %1565 = vmatprep.subr.bf16.mxu0 0
        %1566 = vmatpush1.bf16.msra.mxu0 %v1509
        %1567 = vmatprep.subr.bf16.mxu0 0
        %1568 = vmatpush1.bf16.msra.mxu0 %v1510
        %1569 = vmatprep.subr.bf16.mxu0 0
        %1570 = vmatpush1.bf16.msra.mxu0 %v1511
        %1571 = vmatprep.subr.bf16.mxu0 0
        %1572 = vmatpush1.bf16.msra.mxu0 %v1512
        %1573 = vmatprep.subr.bf16.mxu0 0
        %1574 = vmatpush1.bf16.msra.mxu0 %v1513
        %1575 = vmatprep.subr.bf16.mxu0 0
        %1576 = vmatpush1.bf16.msra.mxu0 %v1514
        %1577 = vmatprep.subr.bf16.mxu0 0
        %1578 = vmatpush1.bf16.msra.mxu0 %v1515
        %1579 = vmatprep.subr.bf16.mxu0 0
        %1580 = vmatpush1.bf16.msra.mxu0 %v1516
        %1581 = vmatprep.mubr.bf16.mxu0 %v1021
        %1582 = vmatmul.mubr.bf16.gmra.mrb[0].mxu0 %v1018
        %v1583 = vpop.f32.mrb[0].mxu0
        %v1584 = vadd.f32 %v1375, %v1583
        %v1585 = vpop.f32.mrb[0].mxu0
        %v1586 = vpop.f32.mrb[0].mxu0
        %v1587 = vadd.f32 %v1378, %v1586
        %v1588 = vpop.f32.mrb[0].mxu0
        %1589 = vmatprep.mubr.bf16.mxu0 %v991
        %1590 = vmatmul.mubr.bf16.gmra.mrb[0].mxu0 %v989
        %v1591 = vpop.f32.mrb[0].mxu0
        %v1592 = vadd.f32 %v1383, %v1591
        %v1593 = vpop.f32.mrb[0].mxu0
        %v1594 = vpop.f32.mrb[0].mxu0
        %v1595 = vadd.f32 %v1386, %v1594
        %v1596 = vpop.f32.mrb[0].mxu0
        %1597 = vmatprep.mubr.bf16.mxu0 %v997
        %1598 = vmatmul.mubr.bf16.gmra.mrb[0].mxu0 %v995
        %v1599 = vpop.f32.mrb[0].mxu0
        %v1600 = vadd.f32 %v1391, %v1599
        %v1601 = vpop.f32.mrb[0].mxu0
        %v1602 = vpop.f32.mrb[0].mxu0
        %v1603 = vadd.f32 %v1394, %v1602
        %v1604 = vpop.f32.mrb[0].mxu0
        %1605 = vmatprep.mubr.bf16.mxu0 %v1003
        %1606 = vmatmul.mubr.bf16.gmra.mrb[0].mxu0 %v1001
        %v1607 = vpop.f32.mrb[0].mxu0
        %v1608 = vadd.f32 %v1399, %v1607
        %v1609 = vpop.f32.mrb[0].mxu0
        %v1610 = vpop.f32.mrb[0].mxu0
        %v1611 = vadd.f32 %v1402, %v1610
        %v1612 = vpop.f32.mrb[0].mxu0
        %1613 = vdwg.mxu0
        %1614 = vmatprep.subr.bf16.mxu0 0
        %1615 = vmatpush1.bf16.msra.mxu0 %v1517
        %1616 = vmatprep.subr.bf16.mxu0 0
        %1617 = vmatpush1.bf16.msra.mxu0 %v1518
        %1618 = vmatprep.subr.bf16.mxu0 0
        %1619 = vmatpush1.bf16.msra.mxu0 %v1519
        %1620 = vmatprep.subr.bf16.mxu0 0
        %1621 = vmatpush1.bf16.msra.mxu0 %v1520
        %1622 = vmatprep.subr.bf16.mxu0 0
        %1623 = vmatpush1.bf16.msra.mxu0 %v1521
        %1624 = vmatprep.subr.bf16.mxu0 0
        %1625 = vmatpush1.bf16.msra.mxu0 %v1522
        %1626 = vmatprep.subr.bf16.mxu0 0
        %1627 = vmatpush1.bf16.msra.mxu0 %v1523
        %1628 = vmatprep.subr.bf16.mxu0 0
        %1629 = vmatpush1.bf16.msra.mxu0 %v1524
        %1630 = vmatprep.subr.bf16.mxu0 0
        %1631 = vmatpush1.bf16.msra.mxu0 0
        %1632 = vmatprep.subr.bf16.mxu0 0
        %1633 = vmatpush1.bf16.msra.mxu0 0
        %1634 = vmatprep.subr.bf16.mxu0 0
        %1635 = vmatpush1.bf16.msra.mxu0 0
        %1636 = vmatprep.subr.bf16.mxu0 0
        %1637 = vmatpush1.bf16.msra.mxu0 0
        %1638 = vmatprep.subr.bf16.mxu0 0
        %1639 = vmatpush1.bf16.msra.mxu0 0
        %1640 = vmatprep.subr.bf16.mxu0 0
        %1641 = vmatpush1.bf16.msra.mxu0 0
        %1642 = vmatprep.subr.bf16.mxu0 0
        %1643 = vmatpush1.bf16.msra.mxu0 0
        %1644 = vmatprep.subr.bf16.mxu0 0
        %1645 = vmatpush1.bf16.msra.mxu0 0
        %1646 = vmatprep.mubr.bf16.mxu0 0
        %1647 = vmatmul.mubr.bf16.gmra.mrb[0].mxu0 %v1024
        %v1648 = vpop.f32.mrb[0].mxu0
        %v1649 = vadd.f32 %v1584, %v1648
        %v1650 = vpop.f32.mrb[0].mxu0
        %v1651 = vpop.f32.mrb[0].mxu0
        %v1652 = vadd.f32 %v1587, %v1651
        %v1653 = vpop.f32.mrb[0].mxu0
        %1654 = vmatprep.mubr.bf16.mxu0 0
        %1655 = vmatmul.mubr.bf16.gmra.mrb[0].mxu0 %v993
        %v1656 = vpop.f32.mrb[0].mxu0
        %v1657 = vadd.f32 %v1592, %v1656
        %v1658 = vpop.f32.mrb[0].mxu0
        %v1659 = vpop.f32.mrb[0].mxu0
        %v1660 = vadd.f32 %v1595, %v1659
        %v1661 = vpop.f32.mrb[0].mxu0
        %1662 = vmatprep.mubr.bf16.mxu0 0
        %1663 = vmatmul.mubr.bf16.gmra.mrb[0].mxu0 %v999
        %v1664 = vpop.f32.mrb[0].mxu0
        %v1665 = vadd.f32 %v1600, %v1664
        %v1666 = vpop.f32.mrb[0].mxu0
        %v1667 = vpop.f32.mrb[0].mxu0
        %v1668 = vadd.f32 %v1603, %v1667
        %v1669 = vpop.f32.mrb[0].mxu0
        %1670 = vmatprep.mubr.bf16.mxu0 0
        %1671 = vmatmul.mubr.bf16.gmra.mrb[0].mxu0 %v1005
        %v1672 = vpop.f32.mrb[0].mxu0
        %v1673 = vadd.f32 %v1608, %v1672
        %v1674 = vpop.f32.mrb[0].mxu0
        %v1675 = vpop.f32.mrb[0].mxu0
        %v1676 = vadd.f32 %v1611, %v1675
        %v1677 = vpop.f32.mrb[0].mxu0
        %1678 = vdwg.mxu0
        %v1679 = vld [vmem:[#allocation2 + $0x180] sm:$0xf]
        %v1680 = vld [vmem:[#allocation2 + $0x184] sm:$0xf]
        %v1681 = vld [vmem:[#allocation2 + $0x188] sm:$0xf]
        %v1682 = vld [vmem:[#allocation2 + $0x18c] sm:$0xf]
        %v1683 = vld [vmem:[#allocation2 + $0x190] sm:$0xf]
        %v1684 = vld [vmem:[#allocation2 + $0x194] sm:$0xf]
        %v1685 = vld [vmem:[#allocation2 + $0x198] sm:$0xf]
        %v1686 = vld [vmem:[#allocation2 + $0x19c] sm:$0xf]
        %v1687 = vld [vmem:[#allocation2 + $0x1a0] sm:$0xf]
        %v1688 = vld [vmem:[#allocation2 + $0x1a4] sm:$0xf]
        %v1689 = vld [vmem:[#allocation2 + $0x1a8] sm:$0xf]
        %v1690 = vld [vmem:[#allocation2 + $0x1ac] sm:$0xf]
        %v1691 = vld [vmem:[#allocation2 + $0x1b0] sm:$0xf]
        %v1692 = vld [vmem:[#allocation2 + $0x1b4] sm:$0xf]
        %v1693 = vld [vmem:[#allocation2 + $0x1b8] sm:$0xf]
        %v1694 = vld [vmem:[#allocation2 + $0x1bc] sm:$0xf]
        %v1695 = vld [vmem:[#allocation2 + $0x1c0] sm:$0xf]
        %v1696 = vld [vmem:[#allocation2 + $0x1c4] sm:$0xf]
        %v1697 = vld [vmem:[#allocation2 + $0x1c8] sm:$0xf]
        %v1698 = vld [vmem:[#allocation2 + $0x1cc] sm:$0xf]
        %v1699 = vld [vmem:[#allocation2 + $0x1d0] sm:$0xf]
        %v1700 = vld [vmem:[#allocation2 + $0x1d4] sm:$0xf]
        %v1701 = vld [vmem:[#allocation2 + $0x1d8] sm:$0xf]
        %v1702 = vld [vmem:[#allocation2 + $0x1dc] sm:$0xf]
        %v1703 = vld [vmem:[#allocation2 + $0x1e0] sm:$0xf]
        %v1704 = vld [vmem:[#allocation2 + $0x1e4] sm:$0xf]
        %v1705 = vld [vmem:[#allocation2 + $0x1e8] sm:$0xf]
        %v1706 = vld [vmem:[#allocation2 + $0x1ec] sm:$0xf]
        %v1707 = vld [vmem:[#allocation2 + $0x1f0] sm:$0xf]
        %v1708 = vld [vmem:[#allocation2 + $0x1f4] sm:$0xf]
        %v1709 = vld [vmem:[#allocation2 + $0x1f8] sm:$0xf]
        %v1710 = vld [vmem:[#allocation2 + $0x1fc] sm:$0xf]
        %v1711 = vld [vmem:[#allocation2 + $0x200] sm:$0xf]
        %v1712 = vld [vmem:[#allocation2 + $0x204] sm:$0xf]
        %v1713 = vld [vmem:[#allocation2 + $0x208] sm:$0xf]
        %v1714 = vld [vmem:[#allocation2 + $0x20c] sm:$0xf]
        %v1715 = vld [vmem:[#allocation2 + $0x210] sm:$0xf]
        %v1716 = vld [vmem:[#allocation2 + $0x214] sm:$0xf]
        %v1717 = vld [vmem:[#allocation2 + $0x218] sm:$0xf]
        %v1718 = vld [vmem:[#allocation2 + $0x21c] sm:$0xf]
        %v1719 = vld [vmem:[#allocation2 + $0x220] sm:$0xf]
        %v1720 = vld [vmem:[#allocation2 + $0x224] sm:$0xf]
        %v1721 = vld [vmem:[#allocation2 + $0x228] sm:$0xf]
        %v1722 = vld [vmem:[#allocation2 + $0x22c] sm:$0xf]
        %v1723 = vld [vmem:[#allocation2 + $0x230] sm:$0xf]
        %v1724 = vld [vmem:[#allocation2 + $0x234] sm:$0xf]
        %v1725 = vld [vmem:[#allocation2 + $0x238] sm:$0xf]
        %v1726 = vld [vmem:[#allocation2 + $0x23c] sm:$0xf]
        %v1775 = vunpack.c.l.b16 %v1679
        %v1776 = vunpack.c.l.b16 %v1680
        %v1777 = vunpack.c.l.b16 %v1681
        %v1778 = vunpack.c.l.b16 %v1682
        %v1779 = vunpack.c.l.b16 %v1683
        %v1780 = vunpack.c.l.b16 %v1684
        %v1781 = vunpack.c.l.b16 %v1685
        %v1782 = vunpack.c.l.b16 %v1686
        %v1783 = vunpack.c.l.b16 %v1687
        %v1784 = vunpack.c.l.b16 %v1688
        %v1785 = vunpack.c.l.b16 %v1689
        %v1786 = vunpack.c.l.b16 %v1690
        %v1787 = vunpack.c.l.b16 %v1691
        %v1788 = vunpack.c.l.b16 %v1692
        %v1789 = vunpack.c.l.b16 %v1693
        %v1790 = vunpack.c.l.b16 %v1694
        %v1791 = vunpack.c.l.b16 %v1695
        %v1792 = vunpack.c.l.b16 %v1696
        %v1793 = vunpack.c.l.b16 %v1697
        %v1794 = vunpack.c.l.b16 %v1698
        %v1795 = vunpack.c.l.b16 %v1699
        %v1796 = vunpack.c.l.b16 %v1700
        %v1797 = vunpack.c.l.b16 %v1701
        %v1798 = vunpack.c.l.b16 %v1702
        %v1799 = vunpack.c.l.b16 %v1703
        %v1800 = vunpack.c.l.b16 %v1704
        %v1801 = vunpack.c.l.b16 %v1705
        %v1802 = vunpack.c.l.b16 %v1706
        %v1803 = vunpack.c.l.b16 %v1707
        %v1804 = vunpack.c.l.b16 %v1708
        %v1805 = vunpack.c.l.b16 %v1709
        %v1806 = vunpack.c.l.b16 %v1710
        %v1807 = vunpack.c.l.b16 %v1711
        %v1808 = vunpack.c.l.b16 %v1712
        %v1809 = vunpack.c.l.b16 %v1713
        %v1810 = vunpack.c.l.b16 %v1714
        %v1811 = vunpack.c.l.b16 %v1715
        %v1812 = vunpack.c.l.b16 %v1716
        %v1813 = vunpack.c.l.b16 %v1717
        %v1814 = vunpack.c.l.b16 %v1718
        %v1815 = vunpack.c.l.b16 %v1719
        %v1816 = vunpack.c.l.b16 %v1720
        %v1817 = vunpack.c.l.b16 %v1721
        %v1818 = vunpack.c.l.b16 %v1722
        %v1819 = vunpack.c.l.b16 %v1723
        %v1820 = vunpack.c.l.b16 %v1724
        %v1821 = vunpack.c.l.b16 %v1725
        %v1822 = vunpack.c.l.b16 %v1726
        %v1823 = vpack.c.b16 %v1776, %v1775
        %v1824 = vpack.c.b16 %v1778, %v1777
        %v1825 = vpack.c.b16 %v1780, %v1779
        %v1826 = vpack.c.b16 %v1782, %v1781
        %v1827 = vpack.c.b16 %v1784, %v1783
        %v1828 = vpack.c.b16 %v1786, %v1785
        %v1829 = vpack.c.b16 %v1788, %v1787
        %v1830 = vpack.c.b16 %v1790, %v1789
        %v1831 = vpack.c.b16 %v1792, %v1791
        %v1832 = vpack.c.b16 %v1794, %v1793
        %v1833 = vpack.c.b16 %v1796, %v1795
        %v1834 = vpack.c.b16 %v1798, %v1797
        %v1835 = vpack.c.b16 %v1800, %v1799
        %v1836 = vpack.c.b16 %v1802, %v1801
        %v1837 = vpack.c.b16 %v1804, %v1803
        %v1838 = vpack.c.b16 %v1806, %v1805
        %v1839 = vpack.c.b16 %v1808, %v1807
        %v1840 = vpack.c.b16 %v1810, %v1809
        %v1841 = vpack.c.b16 %v1812, %v1811
        %v1842 = vpack.c.b16 %v1814, %v1813
        %v1843 = vpack.c.b16 %v1816, %v1815
        %v1844 = vpack.c.b16 %v1818, %v1817
        %v1845 = vpack.c.b16 %v1820, %v1819
        %v1846 = vpack.c.b16 %v1822, %v1821
        %1871 = vmatprep.subr.bf16.mxu0 0
        %1872 = vmatpush1.bf16.msra.mxu0 %v1823
        %1873 = vmatprep.subr.bf16.mxu0 0
        %1874 = vmatpush1.bf16.msra.mxu0 %v1824
        %1875 = vmatprep.subr.bf16.mxu0 0
        %1876 = vmatpush1.bf16.msra.mxu0 %v1825
        %1877 = vmatprep.subr.bf16.mxu0 0
        %1878 = vmatpush1.bf16.msra.mxu0 %v1826
        %1879 = vmatprep.subr.bf16.mxu0 0
        %1880 = vmatpush1.bf16.msra.mxu0 %v1827
        %1881 = vmatprep.subr.bf16.mxu0 0
        %1882 = vmatpush1.bf16.msra.mxu0 %v1828
        %1883 = vmatprep.subr.bf16.mxu0 0
        %1884 = vmatpush1.bf16.msra.mxu0 %v1829
        %1885 = vmatprep.subr.bf16.mxu0 0
        %1886 = vmatpush1.bf16.msra.mxu0 %v1830
        %1887 = vmatprep.subr.bf16.mxu0 0
        %1888 = vmatpush1.bf16.msra.mxu0 %v1831
        %1889 = vmatprep.subr.bf16.mxu0 0
        %1890 = vmatpush1.bf16.msra.mxu0 %v1832
        %1891 = vmatprep.subr.bf16.mxu0 0
        %1892 = vmatpush1.bf16.msra.mxu0 %v1833
        %1893 = vmatprep.subr.bf16.mxu0 0
        %1894 = vmatpush1.bf16.msra.mxu0 %v1834
        %1895 = vmatprep.subr.bf16.mxu0 0
        %1896 = vmatpush1.bf16.msra.mxu0 %v1835
        %1897 = vmatprep.subr.bf16.mxu0 0
        %1898 = vmatpush1.bf16.msra.mxu0 %v1836
        %1899 = vmatprep.subr.bf16.mxu0 0
        %1900 = vmatpush1.bf16.msra.mxu0 %v1837
        %1901 = vmatprep.subr.bf16.mxu0 0
        %1902 = vmatpush1.bf16.msra.mxu0 %v1838
        %1903 = vmatprep.mubr.bf16.mxu0 %v991
        %1904 = vmatmul.mubr.bf16.gmra.mrb[0].mxu0 %v989
        %v1905 = vpop.f32.mrb[0].mxu0
        %v1906 = vadd.f32 0.0, %v1905
        %v1907 = vpop.f32.mrb[0].mxu0
        %v1908 = vpop.f32.mrb[0].mxu0
        %v1909 = vadd.f32 0.0, %v1908
        %v1910 = vpop.f32.mrb[0].mxu0
        %1911 = vmatprep.mubr.bf16.mxu0 %v997
        %1912 = vmatmul.mubr.bf16.gmra.mrb[0].mxu0 %v995
        %v1913 = vpop.f32.mrb[0].mxu0
        %v1914 = vadd.f32 0.0, %v1913
        %v1915 = vpop.f32.mrb[0].mxu0
        %v1916 = vpop.f32.mrb[0].mxu0
        %v1917 = vadd.f32 0.0, %v1916
        %v1918 = vpop.f32.mrb[0].mxu0
        %1919 = vmatprep.mubr.bf16.mxu0 %v1003
        %1920 = vmatmul.mubr.bf16.gmra.mrb[0].mxu0 %v1001
        %v1921 = vpop.f32.mrb[0].mxu0
        %v1922 = vadd.f32 0.0, %v1921
        %v1923 = vpop.f32.mrb[0].mxu0
        %v1924 = vpop.f32.mrb[0].mxu0
        %v1925 = vadd.f32 0.0, %v1924
        %v1926 = vpop.f32.mrb[0].mxu0
        %1927 = vmatprep.mubr.bf16.mxu0 %v1030
        %1928 = vmatmul.mubr.bf16.gmra.mrb[0].mxu0 %v1027
        %v1929 = vpop.f32.mrb[0].mxu0
        %v1930 = vadd.f32 0.0, %v1929
        %v1931 = vpop.f32.mrb[0].mxu0
        %v1932 = vpop.f32.mrb[0].mxu0
        %v1933 = vadd.f32 0.0, %v1932
        %v1934 = vpop.f32.mrb[0].mxu0
        %1935 = vdwg.mxu0
        %1936 = vmatprep.subr.bf16.mxu0 0
        %1937 = vmatpush1.bf16.msra.mxu0 %v1839
        %1938 = vmatprep.subr.bf16.mxu0 0
        %1939 = vmatpush1.bf16.msra.mxu0 %v1840
        %1940 = vmatprep.subr.bf16.mxu0 0
        %1941 = vmatpush1.bf16.msra.mxu0 %v1841
        %1942 = vmatprep.subr.bf16.mxu0 0
        %1943 = vmatpush1.bf16.msra.mxu0 %v1842
        %1944 = vmatprep.subr.bf16.mxu0 0
        %1945 = vmatpush1.bf16.msra.mxu0 %v1843
        %1946 = vmatprep.subr.bf16.mxu0 0
        %1947 = vmatpush1.bf16.msra.mxu0 %v1844
        %1948 = vmatprep.subr.bf16.mxu0 0
        %1949 = vmatpush1.bf16.msra.mxu0 %v1845
        %1950 = vmatprep.subr.bf16.mxu0 0
        %1951 = vmatpush1.bf16.msra.mxu0 %v1846
        %1952 = vmatprep.subr.bf16.mxu0 0
        %1953 = vmatpush1.bf16.msra.mxu0 0
        %1954 = vmatprep.subr.bf16.mxu0 0
        %1955 = vmatpush1.bf16.msra.mxu0 0
        %1956 = vmatprep.subr.bf16.mxu0 0
        %1957 = vmatpush1.bf16.msra.mxu0 0
        %1958 = vmatprep.subr.bf16.mxu0 0
        %1959 = vmatpush1.bf16.msra.mxu0 0
        %1960 = vmatprep.subr.bf16.mxu0 0
        %1961 = vmatpush1.bf16.msra.mxu0 0
        %1962 = vmatprep.subr.bf16.mxu0 0
        %1963 = vmatpush1.bf16.msra.mxu0 0
        %1964 = vmatprep.subr.bf16.mxu0 0
        %1965 = vmatpush1.bf16.msra.mxu0 0
        %1966 = vmatprep.subr.bf16.mxu0 0
        %1967 = vmatpush1.bf16.msra.mxu0 0
        %1968 = vmatprep.mubr.bf16.mxu0 0
        %1969 = vmatmul.mubr.bf16.gmra.mrb[0].mxu0 %v993
        %v1970 = vpop.f32.mrb[0].mxu0
        %v1971 = vadd.f32 %v1906, %v1970
        %v1972 = vpop.f32.mrb[0].mxu0
        %v1973 = vpop.f32.mrb[0].mxu0
        %v1974 = vadd.f32 %v1909, %v1973
        %v1975 = vpop.f32.mrb[0].mxu0
        %1976 = vmatprep.mubr.bf16.mxu0 0
        %1977 = vmatmul.mubr.bf16.gmra.mrb[0].mxu0 %v999
        %v1978 = vpop.f32.mrb[0].mxu0
        %v1979 = vadd.f32 %v1914, %v1978
        %v1980 = vpop.f32.mrb[0].mxu0
        %v1981 = vpop.f32.mrb[0].mxu0
        %v1982 = vadd.f32 %v1917, %v1981
        %v1983 = vpop.f32.mrb[0].mxu0
        %1984 = vmatprep.mubr.bf16.mxu0 0
        %1985 = vmatmul.mubr.bf16.gmra.mrb[0].mxu0 %v1005
        %v1986 = vpop.f32.mrb[0].mxu0
        %v1987 = vadd.f32 %v1922, %v1986
        %v1988 = vpop.f32.mrb[0].mxu0
        %v1989 = vpop.f32.mrb[0].mxu0
        %v1990 = vadd.f32 %v1925, %v1989
        %v1991 = vpop.f32.mrb[0].mxu0
        %1992 = vmatprep.mubr.bf16.mxu0 0
        %1993 = vmatmul.mubr.bf16.gmra.mrb[0].mxu0 %v1033
        %v1994 = vpop.f32.mrb[0].mxu0
        %v1995 = vadd.f32 %v1930, %v1994
        %v1996 = vpop.f32.mrb[0].mxu0
        %v1997 = vpop.f32.mrb[0].mxu0
        %v1998 = vadd.f32 %v1933, %v1997
        %v1999 = vpop.f32.mrb[0].mxu0
        %2000 = vdwg.mxu0
        %v2001 = vadd.f32 %v1649, %v1971
        %v2002 = vadd.f32 %v1652, %v1974
        %v2003 = vadd.f32 %v1657, %v1979
        %v2004 = vadd.f32 %v1660, %v1982
        %v2005 = vadd.f32 %v1665, %v1987
        %v2006 = vadd.f32 %v1668, %v1990
        %v2007 = vadd.f32 %v1673, %v1995
        %v2008 = vadd.f32 %v1676, %v1998
        %v2009 = vld [vmem:[%s5] sm:$0x1]
        %v2011 = vlaneseq
        %v2012 = vshrl.u32 %v2011, 7
        %v2013 = vsub.s32 0, %v2012
        %v2014 = vrot.slane %v2009, %v2013
        %v2016 = vmul.f32 %v2001, %v2014
        %v2017 = vmul.f32 %v2002, %v2014
        %v2018 = vmul.f32 %v2003, %v2014
        %v2019 = vmul.f32 %v2004, %v2014
        %v2020 = vmul.f32 %v2005, %v2014
        %v2021 = vmul.f32 %v2006, %v2014
        %v2022 = vmul.f32 %v2007, %v2014
        %v2023 = vmul.f32 %v2008, %v2014
        %v2024 = vld [vmem:[%s6] sm:$0x1]
        %v2026 = vlaneseq
        %v2027 = vshrl.u32 %v2026, 7
        %v2028 = vsub.s32 0, %v2027
        %v2029 = vrot.slane %v2024, %v2028
        %v2031 = vadd.f32 %v2016, %v2029
        %v2032 = vadd.f32 %v2017, %v2029
        %v2033 = vadd.f32 %v2018, %v2029
        %v2034 = vadd.f32 %v2019, %v2029
        %v2035 = vadd.f32 %v2020, %v2029
        %v2036 = vadd.f32 %v2021, %v2029
        %v2037 = vadd.f32 %v2022, %v2029
        %v2038 = vadd.f32 %v2023, %v2029
        %v2039 = vmax.f32 %v2031, 0.0
        %v2040 = vmax.f32 %v2032, 0.0
        %v2041 = vmax.f32 %v2033, 0.0
        %v2042 = vmax.f32 %v2034, 0.0
        %v2043 = vmax.f32 %v2035, 0.0
        %v2044 = vmax.f32 %v2036, 0.0
        %v2045 = vmax.f32 %v2037, 0.0
        %v2046 = vmax.f32 %v2038, 0.0
        %v2047 = vadd.f32 %v2039, %v2040
        %v2048 = vadd.f32 %v2047, %v2041
        %v2049 = vadd.f32 %v2048, %v2042
        %v2050 = vadd.f32 %v2049, %v2043
        %v2051 = vadd.f32 %v2050, %v2044
        %v2052 = vadd.f32 %v2051, %v2045
        %v2053 = vadd.f32 %v2052, %v2046
        %v2054 = vrot.slane %v2053, 4
        %v2055 = vadd.f32 %v2053, %v2054
        %v2056 = vrot.slane %v2055, 2
        %v2057 = vadd.f32 %v2055, %v2056
        %v2058 = vrot.slane %v2057, 1
        %v2059 = vadd.f32 %v2057, %v2058
        %v2060 = vrcp.pop 64.0
        %v2061 = vmul.f32 %v2059, %v2060
        %v2062 = vpack.c.bf16 %v2061, %v2061
        %v2063 = vld [vmem:[%s7] sm:$0xf]
        %v2064 = vld [vmem:[%s7 + $0x4] sm:$0xf]
        %v2065 = vld [vmem:[%s7 + $0x8] sm:$0xf]
        %v2066 = vld [vmem:[%s7 + $0xc] sm:$0xf]
        %v2067 = vld [vmem:[%s7 + $0x10] sm:$0xf]
        %v2068 = vld [vmem:[%s7 + $0x14] sm:$0xf]
        %v2069 = vld [vmem:[%s7 + $0x18] sm:$0xf]
        %v2070 = vld [vmem:[%s7 + $0x1c] sm:$0xf]
        %v2071 = vld [vmem:[%s7 + $0x20] sm:$0xf]
        %v2072 = vld [vmem:[%s7 + $0x24] sm:$0xf]
        %v2073 = vld [vmem:[%s7 + $0x28] sm:$0xf]
        %v2074 = vld [vmem:[%s7 + $0x2c] sm:$0xf]
        %v2075 = vld [vmem:[%s7 + $0x30] sm:$0xf]
        %v2076 = vld [vmem:[%s7 + $0x34] sm:$0xf]
        %v2077 = vld [vmem:[%s7 + $0x38] sm:$0xf]
        %v2078 = vld [vmem:[%s7 + $0x3c] sm:$0xf]
        %v2079 = vld [vmem:[%s8] sm:$0x1]
        %v2096 = vunpack.c.l.b16 %v2063
        %v2097 = vunpack.c.l.b16 %v2064
        %v2098 = vunpack.c.l.b16 %v2065
        %v2099 = vunpack.c.l.b16 %v2066
        %v2100 = vunpack.c.l.b16 %v2067
        %v2101 = vunpack.c.l.b16 %v2068
        %v2102 = vunpack.c.l.b16 %v2069
        %v2103 = vunpack.c.l.b16 %v2070
        %v2104 = vunpack.c.l.b16 %v2071
        %v2105 = vunpack.c.l.b16 %v2072
        %v2106 = vunpack.c.l.b16 %v2073
        %v2107 = vunpack.c.l.b16 %v2074
        %v2108 = vunpack.c.l.b16 %v2075
        %v2109 = vunpack.c.l.b16 %v2076
        %v2110 = vunpack.c.l.b16 %v2077
        %v2111 = vunpack.c.l.b16 %v2078
        %v2112 = vpack.c.b16 %v2097, %v2096
        %v2113 = vpack.c.b16 %v2099, %v2098
        %v2114 = vpack.c.b16 %v2101, %v2100
        %v2115 = vpack.c.b16 %v2103, %v2102
        %v2116 = vpack.c.b16 %v2105, %v2104
        %v2117 = vpack.c.b16 %v2107, %v2106
        %v2118 = vpack.c.b16 %v2109, %v2108
        %v2119 = vpack.c.b16 %v2111, %v2110
        %2128 = vmatprep.subr.bf16.mxu0 0
        %2129 = vmatpush1.bf16.msra.mxu0 %v2112
        %2130 = vmatprep.subr.bf16.mxu0 0
        %2131 = vmatpush1.bf16.msra.mxu0 %v2113
        %2132 = vmatprep.subr.bf16.mxu0 0
        %2133 = vmatpush1.bf16.msra.mxu0 %v2114
        %2134 = vmatprep.subr.bf16.mxu0 0
        %2135 = vmatpush1.bf16.msra.mxu0 %v2115
        %2136 = vmatprep.subr.bf16.mxu0 0
        %2137 = vmatpush1.bf16.msra.mxu0 %v2116
        %2138 = vmatprep.subr.bf16.mxu0 0
        %2139 = vmatpush1.bf16.msra.mxu0 %v2117
        %2140 = vmatprep.subr.bf16.mxu0 0
        %2141 = vmatpush1.bf16.msra.mxu0 %v2118
        %2142 = vmatprep.subr.bf16.mxu0 0
        %2143 = vmatpush1.bf16.msra.mxu0 %v2119
        %2144 = vmatprep.subr.bf16.mxu0 0
        %2145 = vmatpush1.bf16.msra.mxu0 0
        %2146 = vmatprep.subr.bf16.mxu0 0
        %2147 = vmatpush1.bf16.msra.mxu0 0
        %2148 = vmatprep.subr.bf16.mxu0 0
        %2149 = vmatpush1.bf16.msra.mxu0 0
        %2150 = vmatprep.subr.bf16.mxu0 0
        %2151 = vmatpush1.bf16.msra.mxu0 0
        %2152 = vmatprep.subr.bf16.mxu0 0
        %2153 = vmatpush1.bf16.msra.mxu0 0
        %2154 = vmatprep.subr.bf16.mxu0 0
        %2155 = vmatpush1.bf16.msra.mxu0 0
        %2156 = vmatprep.subr.bf16.mxu0 0
        %2157 = vmatpush1.bf16.msra.mxu0 0
        %2158 = vmatprep.subr.bf16.mxu0 0
        %2159 = vmatpush1.bf16.msra.mxu0 0
        %2160 = vmatprep.mubr.bf16.mxu0 0
        %2161 = vmatmul.mubr.bf16.gmra.mrb[0].mxu0 %v2062
        %v2162 = vpop.f32.mrb[0].mxu0
        %v2163 = vadd.f32 %v2079, %v2162
        %v2164 = vpop.f32.mrb[0].mxu0
        %v2165 = vpop.f32.mrb[0].mxu0
        %v2166 = vpop.f32.mrb[0].mxu0
        %2167 = vdwg.mxu0
        %v2168 = vmax.f32 %v2163, 0.0
        %v2169 = vpack.c.bf16 %v2168, %v2168
        %v2170 = vld [vmem:[%s9] sm:$0xf]
        %v2171 = vld [vmem:[%s9 + $0x4] sm:$0xf]
        %v2172 = vld [vmem:[%s9 + $0x8] sm:$0xf]
        %v2173 = vld [vmem:[%s9 + $0xc] sm:$0xf]
        %v2174 = vld [vmem:[%s10] sm:$0x1]
        %v2179 = vunpack.c.l.b16 %v2170
        %v2180 = vunpack.c.l.b16 %v2171
        %v2181 = vunpack.c.l.b16 %v2172
        %v2182 = vunpack.c.l.b16 %v2173
        %v2183 = vpack.c.b16 %v2180, %v2179
        %v2184 = vpack.c.b16 %v2182, %v2181
        %vm2187 = vcmask 261120
        %v2189 = vsel %vm2187, %v2169, 0
        %2191 = vmatprep.subr.bf16.mxu0 0
        %2192 = vmatpush1.bf16.msra.mxu0 %v2183
        %2193 = vmatprep.subr.bf16.mxu0 0
        %2194 = vmatpush1.bf16.msra.mxu0 %v2184
        %2195 = vmatprep.subr.bf16.mxu0 0
        %2196 = vmatpush1.bf16.msra.mxu0 0
        %2197 = vmatprep.subr.bf16.mxu0 0
        %2198 = vmatpush1.bf16.msra.mxu0 0
        %2199 = vmatprep.subr.bf16.mxu0 0
        %2200 = vmatpush1.bf16.msra.mxu0 0
        %2201 = vmatprep.subr.bf16.mxu0 0
        %2202 = vmatpush1.bf16.msra.mxu0 0
        %2203 = vmatprep.subr.bf16.mxu0 0
        %2204 = vmatpush1.bf16.msra.mxu0 0
        %2205 = vmatprep.subr.bf16.mxu0 0
        %2206 = vmatpush1.bf16.msra.mxu0 0
        %2207 = vmatprep.subr.bf16.mxu0 0
        %2208 = vmatpush1.bf16.msra.mxu0 0
        %2209 = vmatprep.subr.bf16.mxu0 0
        %2210 = vmatpush1.bf16.msra.mxu0 0
        %2211 = vmatprep.subr.bf16.mxu0 0
        %2212 = vmatpush1.bf16.msra.mxu0 0
        %2213 = vmatprep.subr.bf16.mxu0 0
        %2214 = vmatpush1.bf16.msra.mxu0 0
        %2215 = vmatprep.subr.bf16.mxu0 0
        %2216 = vmatpush1.bf16.msra.mxu0 0
        %2217 = vmatprep.subr.bf16.mxu0 0
        %2218 = vmatpush1.bf16.msra.mxu0 0
        %2219 = vmatprep.subr.bf16.mxu0 0
        %2220 = vmatpush1.bf16.msra.mxu0 0
        %2221 = vmatprep.subr.bf16.mxu0 0
        %2222 = vmatpush1.bf16.msra.mxu0 0
        %2223 = vmatprep.mubr.bf16.mxu0 0
        %2224 = vmatmul.mubr.bf16.gmra.mrb[0].mxu0 %v2189
        %v2225 = vpop.f32.mrb[0].mxu0
        %v2226 = vadd.f32 %v2174, %v2225
        %v2227 = vpop.f32.mrb[0].mxu0
        %v2228 = vpop.f32.mrb[0].mxu0
        %v2229 = vpop.f32.mrb[0].mxu0
        %2230 = vdwg.mxu0
        %v2231 = vmul.f32 %v2226, 0.5
        %v2232 = vtanh.pop %v2231
        %v2233 = vadd.f32 %v2232, 1.0
        %v2234 = vmul.f32 %v2233, 0.5
        %v2235 = vlaneseq
        %v2236 = vshrl.u32 %v2235, 7
        %v2237 = vsub.s32 0, %v2236
        %v2238 = vrot.slane %v2234, %v2237
        %v2239 = vmul.f32 %v2039, %v2238
        %v2240 = vmul.f32 %v2040, %v2238
        %v2241 = vmul.f32 %v2041, %v2238
        %v2242 = vmul.f32 %v2042, %v2238
        %v2243 = vmul.f32 %v2043, %v2238
        %v2244 = vmul.f32 %v2044, %v2238
        %v2245 = vmul.f32 %v2045, %v2238
        %v2246 = vmul.f32 %v2046, %v2238
        %v2247 = vpack.c.bf16 %v2240, %v2239
        %v2248 = vpack.c.bf16 %v2242, %v2241
        %v2249 = vpack.c.bf16 %v2244, %v2243
        %v2250 = vpack.c.bf16 %v2246, %v2245
        %v2251 = vld [vmem:[%s11] sm:$0xf]
        %v2252 = vld [vmem:[%s11 + $0x4] sm:$0xf]
        %v2253 = vld [vmem:[%s11 + $0x8] sm:$0xf]
        %v2254 = vld [vmem:[%s11 + $0xc] sm:$0xf]
        %v2255 = vld [vmem:[%s11 + $0x10] sm:$0xf]
        %v2256 = vld [vmem:[%s11 + $0x14] sm:$0xf]
        %v2257 = vld [vmem:[%s11 + $0x18] sm:$0xf]
        %v2258 = vld [vmem:[%s11 + $0x1c] sm:$0xf]
        %v2259 = vld [vmem:[%s11 + $0x20] sm:$0xf]
        %v2260 = vld [vmem:[%s11 + $0x24] sm:$0xf]
        %v2261 = vld [vmem:[%s11 + $0x28] sm:$0xf]
        %v2262 = vld [vmem:[%s11 + $0x2c] sm:$0xf]
        %v2263 = vld [vmem:[%s11 + $0x30] sm:$0xf]
        %v2264 = vld [vmem:[%s11 + $0x34] sm:$0xf]
        %v2265 = vld [vmem:[%s11 + $0x38] sm:$0xf]
        %v2266 = vld [vmem:[%s11 + $0x3c] sm:$0xf]
        %v2283 = vunpack.c.l.b16 %v2251
        %v2284 = vunpack.c.l.b16 %v2252
        %v2285 = vunpack.c.l.b16 %v2253
        %v2286 = vunpack.c.l.b16 %v2254
        %v2287 = vunpack.c.l.b16 %v2255
        %v2288 = vunpack.c.l.b16 %v2256
        %v2289 = vunpack.c.l.b16 %v2257
        %v2290 = vunpack.c.l.b16 %v2258
        %v2291 = vunpack.c.l.b16 %v2259
        %v2292 = vunpack.c.l.b16 %v2260
        %v2293 = vunpack.c.l.b16 %v2261
        %v2294 = vunpack.c.l.b16 %v2262
        %v2295 = vunpack.c.l.b16 %v2263
        %v2296 = vunpack.c.l.b16 %v2264
        %v2297 = vunpack.c.l.b16 %v2265
        %v2298 = vunpack.c.l.b16 %v2266
        %v2299 = vpack.c.b16 %v2284, %v2283
        %v2300 = vpack.c.b16 %v2286, %v2285
        %v2301 = vpack.c.b16 %v2288, %v2287
        %v2302 = vpack.c.b16 %v2290, %v2289
        %v2303 = vpack.c.b16 %v2292, %v2291
        %v2304 = vpack.c.b16 %v2294, %v2293
        %v2305 = vpack.c.b16 %v2296, %v2295
        %v2306 = vpack.c.b16 %v2298, %v2297
        %2315 = vmatprep.subr.bf16.mxu0 0
        %2316 = vmatpush1.bf16.msra.mxu0 %v2299
        %2317 = vmatprep.subr.bf16.mxu0 0
        %2318 = vmatpush1.bf16.msra.mxu0 %v2300
        %2319 = vmatprep.subr.bf16.mxu0 0
        %2320 = vmatpush1.bf16.msra.mxu0 %v2301
        %2321 = vmatprep.subr.bf16.mxu0 0
        %2322 = vmatpush1.bf16.msra.mxu0 %v2302
        %2323 = vmatprep.subr.bf16.mxu0 0
        %2324 = vmatpush1.bf16.msra.mxu0 %v2303
        %2325 = vmatprep.subr.bf16.mxu0 0
        %2326 = vmatpush1.bf16.msra.mxu0 %v2304
        %2327 = vmatprep.subr.bf16.mxu0 0
        %2328 = vmatpush1.bf16.msra.mxu0 %v2305
        %2329 = vmatprep.subr.bf16.mxu0 0
        %2330 = vmatpush1.bf16.msra.mxu0 %v2306
        %2331 = vmatprep.subr.bf16.mxu0 0
        %2332 = vmatpush1.bf16.msra.mxu0 0
        %2333 = vmatprep.subr.bf16.mxu0 0
        %2334 = vmatpush1.bf16.msra.mxu0 0
        %2335 = vmatprep.subr.bf16.mxu0 0
        %2336 = vmatpush1.bf16.msra.mxu0 0
        %2337 = vmatprep.subr.bf16.mxu0 0
        %2338 = vmatpush1.bf16.msra.mxu0 0
        %2339 = vmatprep.subr.bf16.mxu0 0
        %2340 = vmatpush1.bf16.msra.mxu0 0
        %2341 = vmatprep.subr.bf16.mxu0 0
        %2342 = vmatpush1.bf16.msra.mxu0 0
        %2343 = vmatprep.subr.bf16.mxu0 0
        %2344 = vmatpush1.bf16.msra.mxu0 0
        %2345 = vmatprep.subr.bf16.mxu0 0
        %2346 = vmatpush1.bf16.msra.mxu0 0
        %2347 = vmatprep.mubr.bf16.mxu0 0
        %2348 = vmatmul.mubr.bf16.gmra.mrb[0].mxu0 %v2247
        %v2349 = vpop.f32.mrb[0].mxu0
        %v2350 = vadd.f32 0.0, %v2349
        %v2351 = vpop.f32.mrb[0].mxu0
        %v2352 = vpop.f32.mrb[0].mxu0
        %v2353 = vadd.f32 0.0, %v2352
        %v2354 = vpop.f32.mrb[0].mxu0
        %2355 = vmatprep.mubr.bf16.mxu0 0
        %2356 = vmatmul.mubr.bf16.gmra.mrb[0].mxu0 %v2248
        %v2357 = vpop.f32.mrb[0].mxu0
        %v2358 = vadd.f32 0.0, %v2357
        %v2359 = vpop.f32.mrb[0].mxu0
        %v2360 = vpop.f32.mrb[0].mxu0
        %v2361 = vadd.f32 0.0, %v2360
        %v2362 = vpop.f32.mrb[0].mxu0
        %2363 = vmatprep.mubr.bf16.mxu0 0
        %2364 = vmatmul.mubr.bf16.gmra.mrb[0].mxu0 %v2249
        %v2365 = vpop.f32.mrb[0].mxu0
        %v2366 = vadd.f32 0.0, %v2365
        %v2367 = vpop.f32.mrb[0].mxu0
        %v2368 = vpop.f32.mrb[0].mxu0
        %v2369 = vadd.f32 0.0, %v2368
        %v2370 = vpop.f32.mrb[0].mxu0
        %2371 = vmatprep.mubr.bf16.mxu0 0
        %2372 = vmatmul.mubr.bf16.gmra.mrb[0].mxu0 %v2250
        %v2373 = vpop.f32.mrb[0].mxu0
        %v2374 = vadd.f32 0.0, %v2373
        %v2375 = vpop.f32.mrb[0].mxu0
        %v2376 = vpop.f32.mrb[0].mxu0
        %v2377 = vadd.f32 0.0, %v2376
        %v2378 = vpop.f32.mrb[0].mxu0
        %2379 = vdwg.mxu0
        %v2380 = vld [vmem:[%s12] sm:$0x1]
        %v2382 = vlaneseq
        %v2383 = vshrl.u32 %v2382, 7
        %v2384 = vsub.s32 0, %v2383
        %v2385 = vrot.slane %v2380, %v2384
        %v2387 = vmul.f32 %v2350, %v2385
        %v2388 = vmul.f32 %v2353, %v2385
        %v2389 = vmul.f32 %v2358, %v2385
        %v2390 = vmul.f32 %v2361, %v2385
        %v2391 = vmul.f32 %v2366, %v2385
        %v2392 = vmul.f32 %v2369, %v2385
        %v2393 = vmul.f32 %v2374, %v2385
        %v2394 = vmul.f32 %v2377, %v2385
        %v2395 = vld [vmem:[%s13] sm:$0x1]
        %v2397 = vlaneseq
        %v2398 = vshrl.u32 %v2397, 7
        %v2399 = vsub.s32 0, %v2398
        %v2400 = vrot.slane %v2395, %v2399
        %v2402 = vadd.f32 %v2387, %v2400
        %v2403 = vadd.f32 %v2388, %v2400
        %v2404 = vadd.f32 %v2389, %v2400
        %v2405 = vadd.f32 %v2390, %v2400
        %v2406 = vadd.f32 %v2391, %v2400
        %v2407 = vadd.f32 %v2392, %v2400
        %v2408 = vadd.f32 %v2393, %v2400
        %v2409 = vadd.f32 %v2394, %v2400
        %v2410 = vunpack.c.l.bf16 %v486
        %v2411 = vunpack.c.l.bf16 %v487
        %v2412 = vunpack.c.l.bf16 %v488
        %v2413 = vunpack.c.l.bf16 %v489
        %v2414 = vunpack.c.l.bf16 %v490
        %v2415 = vunpack.c.l.bf16 %v491
        %v2416 = vunpack.c.l.bf16 %v492
        %v2417 = vunpack.c.l.bf16 %v493
        %v2418 = vadd.f32 %v2402, %v2410
        %v2419 = vadd.f32 %v2403, %v2411
        %v2420 = vadd.f32 %v2404, %v2412
        %v2421 = vadd.f32 %v2405, %v2413
        %v2422 = vadd.f32 %v2406, %v2414
        %v2423 = vadd.f32 %v2407, %v2415
        %v2424 = vadd.f32 %v2408, %v2416
        %v2425 = vadd.f32 %v2409, %v2417
        %v2426 = vmax.f32 %v2418, 0.0
        %v2427 = vmax.f32 %v2419, 0.0
        %v2428 = vmax.f32 %v2420, 0.0
        %v2429 = vmax.f32 %v2421, 0.0
        %v2430 = vmax.f32 %v2422, 0.0
        %v2431 = vmax.f32 %v2423, 0.0
        %v2432 = vmax.f32 %v2424, 0.0
        %v2433 = vmax.f32 %v2425, 0.0
        %v2434 = vpack.c.bf16 %v2426, %v2426
        %v2435 = vpack.c.bf16 %v2427, %v2427
        %v2436 = vpack.c.bf16 %v2428, %v2428
        %v2437 = vpack.c.bf16 %v2429, %v2429
        %v2438 = vpack.c.bf16 %v2430, %v2430
        %v2439 = vpack.c.bf16 %v2431, %v2431
        %v2440 = vpack.c.bf16 %v2432, %v2432
        %v2441 = vpack.c.bf16 %v2433, %v2433
        %2442 = vst [vmem:[%s482] sm:$0xf] %v2434
        %2443 = vst [vmem:[%s482 + $0x4] sm:$0xf] %v2435
        %2444 = vst [vmem:[%s482 + $0x8] sm:$0xf] %v2436
        %2445 = vst [vmem:[%s482 + $0xc] sm:$0xf] %v2437
        %2446 = vst [vmem:[%s482 + $0x10] sm:$0xf] %v2438
        %2447 = vst [vmem:[%s482 + $0x14] sm:$0xf] %v2439
        %2448 = vst [vmem:[%s482 + $0x18] sm:$0xf] %v2440
        %2449 = vst [vmem:[%s482 + $0x1c] sm:$0xf] %v2441
        %p2450 = scmp.lt.s32.totalorder %s26, 1
        %s2451 = scalar_select %p2450, %s26, 1
        %s2452 = smul.addr %s2451, 8
        %s2453 = smul.addr %s2452, 4
        %s2454 = scalar_lea.vmem %s14, %s2453
        // Predicated region
        $region81: #{bottleneck_forward.1} parent=75 // pred_check
          %p2455 = pneg %p343
        $region82: #{bottleneck_forward.1} parent=75 // pred_check_branch
          %2457 = sbr.rel (%p2455) target = $region84
        $region83: #{bottleneck_forward.1} parent=75 // pred_region
          _
        $region84: #{bottleneck_forward.1} parent=75 // pred_fallthru
          _
      $region76: #{bottleneck_forward.1} parent=5 // pred_fallthru
        _
      %p2458 = scmp.le.s32.totalorder 2, %s21
      // Predicated region
      $region85: #{bottleneck_forward.1} parent=5 // pred_check
        %p2459 = pneg %p2458
      $region86: #{bottleneck_forward.1} parent=5 // pred_check_branch
        %2461 = sbr.rel (%p2459) target = $region88
      $region87: #{bottleneck_forward.1} parent=5 // pred_region
        %s2462 = ssub.s32 %s21, 2
        // Predicated region
        $region89: #{bottleneck_forward.1} parent=87 // pred_check
          %p2463 = pneg %p349
        $region90: #{bottleneck_forward.1} parent=87 // pred_check_branch
          %2465 = sbr.rel (%p2463) target = $region92
        $region91: #{bottleneck_forward.1} parent=87 // pred_region
          %p2466 = scmp.lt.s32.totalorder %s27, 1
          %s2467 = scalar_select %p2466, %s27, 1
          %s2468 = smul.addr %s2467, 8
          %s2469 = smul.addr %s2468, 4
          %s2470 = scalar_lea.vmem %s14, %s2469
        $region92: #{bottleneck_forward.1} parent=87 // pred_fallthru
          _
      $region88: #{bottleneck_forward.1} parent=5 // pred_fallthru
        _
    $region6: #{bottleneck_forward.1} parent=1 // loop_footer
      %s25 = sadd.s32 1, %s21
    $region7: #{bottleneck_forward.1} parent=1 // loop_footer_branch
      %20 = sbr.rel target = $region3
    $region8: #{bottleneck_forward.1} parent=1 // loop_exit
      _
    %2471 = vsyncpa [#allocation3], 1
    %s2472 = scalar_lea.sflag [#allocation3], 1
    %2473 = vsyncpa %s2472, 1

</llo_original>
